<compile_context>
chip_gen: v5e
topology: v5e:2x2
jax: 0.10.0
libtpu: 0.0.40
codegen_flags: <defaults>
</compile_context>

<pallas_src>
import jax
import jax.numpy as jnp
import numpy as np
from jax.experimental import pallas as pl
from jax.experimental.pallas import tpu as pltpu


# ---------------------------------------------------------------------------
# Fused Pallas kernel (all layers + dense head)
# ---------------------------------------------------------------------------
def _make_fused_kernel(n_layer, T, B, Din, H):
    """Build the fused kernel for fixed (n_layer, T, B, Din, H)."""

    def kernel(*args):
        # ---- unpack refs ----------------------------------------------------
        x_ref = args[0]                               # (T, B, Din)
        layer_refs = args[1:1 + 3 * n_layer]          # per layer: w_ih_t, w_hh_t, b
        wd_ref = args[1 + 3 * n_layer]                # (1, H)   dense weight (row)
        bd_ref = args[2 + 3 * n_layer]                # (1, 1)   dense bias
        o_ref = args[3 + 3 * n_layer]                 # (B, 1)   output
        seq_sc = args[4 + 3 * n_layer]                # (T, B, H) inter-layer hidden seq (VMEM)

        h = None
        for layer in range(n_layer):
            w_ih_ref = layer_refs[3 * layer + 0]      # (Din_l, 4H)
            w_hh_ref = layer_refs[3 * layer + 1]      # (H, 4H)
            b_ref = layer_refs[3 * layer + 2]         # (1, 4H)  (= b_ih + b_hh)

            if layer == 0:
                xin = x_ref[...]                      # (T, B, Din)
                d_in = Din
            else:
                xin = seq_sc[...]                     # (T, B, H)
                d_in = H

            # Hoisted input projection: one big MXU matmul for the whole sequence.
            proj = (
                jnp.dot(xin.reshape(T * B, d_in), w_ih_ref[...],
                        preferred_element_type=jnp.float32)
                + b_ref[...]
            )                                         # (T*B, 4H) value, stays in vregs

            # Hoist recurrent weight load out of the unrolled time loop.
            w_hh = w_hh_ref[...]                      # (H, 4H)

            # h/c carries live as values (vregs) — no scratch round-trips per step.
            h = jnp.zeros((B, H), jnp.float32)
            c = jnp.zeros((B, H), jnp.float32)

            write_seq = layer < n_layer - 1           # last layer only needs h_last

            # T is small and static here, so fully unroll the recurrence with a
            # Python loop (static indices, best LLO visibility).
            # For long T, switch to lax.fori_loop / chunk T over an "arbitrary" grid axis.
            for t in range(T):
                gates = proj[t * B:(t + 1) * B, :] + jnp.dot(
                    h, w_hh, preferred_element_type=jnp.float32
                )                                     # (B, 4H)

                # PyTorch gate order [i, f, g, o].
                # NOTE: with H=32 these are sub-128-lane slices; for production H,
                # pad H to a multiple of 128 or use a gate-major weight layout so
                # each gate is its own lane-aligned array.
                i_g = jax.nn.sigmoid(gates[:, 0 * H:1 * H])
                f_g = jax.nn.sigmoid(gates[:, 1 * H:2 * H])
                g_g = jnp.tanh(gates[:, 2 * H:3 * H])
                o_g = jax.nn.sigmoid(gates[:, 3 * H:4 * H])

                c = f_g * c + i_g * g_g
                h = o_g * jnp.tanh(c)
                if write_seq:
                    seq_sc[t] = h

        # Dense + ReLU head on the last timestep's top-layer hidden state:
        # VPU multiply + lane reduction instead of an N=1 MXU matmul.
        y = jnp.sum(h * wd_ref[...], axis=-1, keepdims=True) + bd_ref[...]   # (B, 1)
        o_ref[...] = jnp.maximum(y, 0.0).astype(o_ref.dtype)

    return kernel


# ---------------------------------------------------------------------------
# Wrapper
# ---------------------------------------------------------------------------
def model_forward(x, kparams):
    """x: (B, T, input_dim) batch-first, like the PyTorch module.
    kparams: output of prepare_params() (kernel-ready weight layout)."""
    B, T, Din = x.shape
    n_layer = len(kparams["lstm"])
    H = kparams["lstm"][0][1].shape[0]                # w_hh_t: (H, 4H)

    x_tm = jnp.transpose(x, (1, 0, 2)).astype(jnp.float32)   # (T, B, Din)

    flat = []
    for (w_ih_t, w_hh_t, b) in kparams["lstm"]:
        flat.extend([w_ih_t, w_hh_t, b])
    flat.extend([kparams["dense_w"], kparams["dense_b"]])

    kernel = _make_fused_kernel(n_layer, T, B, Din, H)
    return pl.pallas_call(
        kernel,
        out_shape=jax.ShapeDtypeStruct((B, 1), jnp.float32),
        scratch_shapes=[
            pltpu.VMEM((T, B, H), jnp.float32),       # inter-layer hidden sequence
        ],
    )(x_tm, *flat)


def prepare_params(params):
    """One-time conversion of PyTorch-layout params into kernel-ready layout:
    transposed weights, combined biases (avoids per-call XLA transposes)."""
    kp = {"lstm": []}
    for (w_ih, w_hh, b_ih, b_hh) in params["lstm"]:
        kp["lstm"].append((
            jnp.transpose(w_ih),               # (Din, 4H)
            jnp.transpose(w_hh),               # (H, 4H)
            (b_ih + b_hh)[None, :],            # (1, 4H)
        ))
    kp["dense_w"] = params["dense_w"]          # (1, H)  used as a broadcast row
    kp["dense_b"] = params["dense_b"][None, :] # (1, 1)
    return kp


# ---------------------------------------------------------------------------
# Pure-JAX reference (PyTorch-layout params) for correctness check
# ---------------------------------------------------------------------------
def reference_forward(x, params):
    B = x.shape[0]
    h_seq = jnp.transpose(x, (1, 0, 2)).astype(jnp.float32)  # (T, B, Din)
    for (w_ih, w_hh, b_ih, b_hh) in params["lstm"]:
        H = w_hh.shape[1]

        def step(carry, x_t):
            h, c = carry
            gates = x_t @ w_ih.T + h @ w_hh.T + b_ih + b_hh
            i_g = jax.nn.sigmoid(gates[:, 0 * H:1 * H])
            f_g = jax.nn.sigmoid(gates[:, 1 * H:2 * H])
            g_g = jnp.tanh(gates[:, 2 * H:3 * H])
            o_g = jax.nn.sigmoid(gates[:, 3 * H:4 * H])
            c = f_g * c + i_g * g_g
            h = o_g * jnp.tanh(c)
            return (h, c), h

        init = (jnp.zeros((B, H), jnp.float32), jnp.zeros((B, H), jnp.float32))
        _, h_seq = jax.lax.scan(step, init, h_seq)
    h_last = h_seq[-1]
    return jnp.maximum(h_last @ params["dense_w"].T + params["dense_b"], 0.0)


# ---------------------------------------------------------------------------
# Deterministic parameter init (PyTorch-style uniform(-1/sqrt(H), 1/sqrt(H)))
# ---------------------------------------------------------------------------
def init_params(key, input_dim, hidden_dim, n_layer):
    bound = 1.0 / np.sqrt(hidden_dim)
    params = {"lstm": []}
    for layer in range(n_layer):
        d_in = input_dim if layer == 0 else hidden_dim
        key, k1, k2, k3, k4 = jax.random.split(key, 5)
        w_ih = jax.random.uniform(k1, (4 * hidden_dim, d_in), jnp.float32, -bound, bound)
        w_hh = jax.random.uniform(k2, (4 * hidden_dim, hidden_dim), jnp.float32, -bound, bound)
        b_ih = jax.random.uniform(k3, (4 * hidden_dim,), jnp.float32, -bound, bound)
        b_hh = jax.random.uniform(k4, (4 * hidden_dim,), jnp.float32, -bound, bound)
        params["lstm"].append((w_ih, w_hh, b_ih, b_hh))
    key, k5, k6 = jax.random.split(key, 3)
    params["dense_w"] = jax.random.uniform(k5, (1, hidden_dim), jnp.float32, -bound, bound)
    params["dense_b"] = jax.random.uniform(k6, (1,), jnp.float32, -bound, bound)
    return params


if __name__ == "__main__":
    input_dim, hidden_dim, n_layer = 8, 32, 2
    batch, seq = 2, 8

    key = jax.random.PRNGKey(0)
    key, kx = jax.random.split(key)
    x = jax.random.normal(kx, (batch, seq, input_dim), jnp.float32)
    params = init_params(key, input_dim, hidden_dim, n_layer)
    kparams = prepare_params(params)   # one-time weight layout prep

    out = jax.block_until_ready(model_forward(x, kparams))
    ref = jax.block_until_ready(reference_forward(x, params))

    assert out.shape == (batch, 1), out.shape
    np.testing.assert_allclose(np.asarray(out), np.asarray(ref), rtol=1e-3, atol=1e-3)
    print("KERNEL_OK")
</pallas_src>

<mosaic_0001>
module attributes {stable_mosaic.version = 11 : i64} {
  func.func @kernel(%arg0: memref<8x2x8xf32, #tpu.memory_space<vmem>>, %arg1: memref<8x128xf32, #tpu.memory_space<vmem>>, %arg2: memref<32x128xf32, #tpu.memory_space<vmem>>, %arg3: memref<1x128xf32, #tpu.memory_space<vmem>>, %arg4: memref<32x128xf32, #tpu.memory_space<vmem>>, %arg5: memref<32x128xf32, #tpu.memory_space<vmem>>, %arg6: memref<1x128xf32, #tpu.memory_space<vmem>>, %arg7: memref<1x32xf32, #tpu.memory_space<vmem>>, %arg8: memref<1x1xf32, #tpu.memory_space<vmem>>, %arg9: memref<2x1xf32, #tpu.memory_space<vmem>>, %arg10: memref<8x2x32xf32, #tpu.memory_space<vmem>>) attributes {dimension_semantics = [], scalar_prefetch = 0 : i64, scratch_operands = 1 : i64, tpu.core_type = #tpu.core_type<tc>} {
    %c0 = arith.constant 0 : index
    %c0_0 = arith.constant 0 : index
    %c0_1 = arith.constant 0 : index
    %0 = vector.load %arg0[%c0, %c0_0, %c0_1] : memref<8x2x8xf32, #tpu.memory_space<vmem>>, vector<8x2x8xf32>
    %1 = vector.shape_cast %0 : vector<8x2x8xf32> to vector<16x8xf32>
    %c0_2 = arith.constant 0 : index
    %c0_3 = arith.constant 0 : index
    %2 = vector.load %arg1[%c0_2, %c0_3] : memref<8x128xf32, #tpu.memory_space<vmem>>, vector<8x128xf32>
    %cst = arith.constant dense<0.000000e+00> : vector<16x128xf32>
    %3 = tpu.matmul %1, %2, %cst {dimension_numbers = #tpu.dot_dimension_numbers<[1], [0], [0], [1], [0, 0, 1, 1], [], []>} : vector<16x8xf32>, vector<8x128xf32>, vector<16x128xf32> -> vector<16x128xf32>
    %c0_4 = arith.constant 0 : index
    %c0_5 = arith.constant 0 : index
    %4 = vector.load %arg3[%c0_4, %c0_5] : memref<1x128xf32, #tpu.memory_space<vmem>>, vector<1x128xf32>
    %5 = vector.broadcast %4 : vector<1x128xf32> to vector<16x128xf32>
    %6 = arith.addf %3, %5 : vector<16x128xf32>
    %c0_6 = arith.constant 0 : index
    %c0_7 = arith.constant 0 : index
    %7 = vector.load %arg2[%c0_6, %c0_7] : memref<32x128xf32, #tpu.memory_space<vmem>>, vector<32x128xf32>
    %cst_8 = arith.constant 0.000000e+00 : f32
    %8 = vector.broadcast %cst_8 : f32 to vector<2x32xf32>
    %cst_9 = arith.constant 0.000000e+00 : f32
    %9 = vector.broadcast %cst_9 : f32 to vector<2x32xf32>
    %10 = vector.extract_strided_slice %6 {offsets = [0, 0], sizes = [2, 128], strides = [1, 1]} : vector<16x128xf32> to vector<2x128xf32>
    %cst_10 = arith.constant dense<0.000000e+00> : vector<2x128xf32>
    %11 = tpu.matmul %8, %7, %cst_10 {dimension_numbers = #tpu.dot_dimension_numbers<[1], [0], [0], [1], [0, 0, 1, 1], [], []>} : vector<2x32xf32>, vector<32x128xf32>, vector<2x128xf32> -> vector<2x128xf32>
    %12 = arith.addf %10, %11 : vector<2x128xf32>
    %13 = vector.extract_strided_slice %12 {offsets = [0, 0], sizes = [2, 32], strides = [1, 1]} : vector<2x128xf32> to vector<2x32xf32>
    %14 = arith.negf %13 : vector<2x32xf32>
    %15 = math.exp %14 : vector<2x32xf32>
    %cst_11 = arith.constant 1.000000e+00 : f32
    %16 = vector.broadcast %cst_11 : f32 to vector<2x32xf32>
    %17 = arith.addf %16, %15 : vector<2x32xf32>
    %18 = arith.divf %16, %17 : vector<2x32xf32>
    %19 = vector.extract_strided_slice %12 {offsets = [0, 32], sizes = [2, 32], strides = [1, 1]} : vector<2x128xf32> to vector<2x32xf32>
    %20 = arith.negf %19 : vector<2x32xf32>
    %21 = math.exp %20 : vector<2x32xf32>
    %cst_12 = arith.constant 1.000000e+00 : f32
    %22 = vector.broadcast %cst_12 : f32 to vector<2x32xf32>
    %23 = arith.addf %22, %21 : vector<2x32xf32>
    %24 = arith.divf %22, %23 : vector<2x32xf32>
    %25 = vector.extract_strided_slice %12 {offsets = [0, 64], sizes = [2, 32], strides = [1, 1]} : vector<2x128xf32> to vector<2x32xf32>
    %26 = math.tanh %25 : vector<2x32xf32>
    %27 = vector.extract_strided_slice %12 {offsets = [0, 96], sizes = [2, 32], strides = [1, 1]} : vector<2x128xf32> to vector<2x32xf32>
    %28 = arith.negf %27 : vector<2x32xf32>
    %29 = math.exp %28 : vector<2x32xf32>
    %cst_13 = arith.constant 1.000000e+00 : f32
    %30 = vector.broadcast %cst_13 : f32 to vector<2x32xf32>
    %31 = arith.addf %30, %29 : vector<2x32xf32>
    %32 = arith.divf %30, %31 : vector<2x32xf32>
    %33 = arith.mulf %24, %9 : vector<2x32xf32>
    %34 = arith.mulf %18, %26 : vector<2x32xf32>
    %35 = arith.addf %33, %34 : vector<2x32xf32>
    %36 = math.tanh %35 : vector<2x32xf32>
    %37 = arith.mulf %32, %36 : vector<2x32xf32>
    %c0_14 = arith.constant 0 : index
    %c0_15 = arith.constant 0 : index
    %c0_16 = arith.constant 0 : index
    %38 = vector.load %arg10[%c0_14, %c0_15, %c0_16] : memref<8x2x32xf32, #tpu.memory_space<vmem>>, vector<1x2x32xf32>
    %39 = vector.shape_cast %38 : vector<1x2x32xf32> to vector<2x32xf32>
    %40 = vector.shape_cast %37 : vector<2x32xf32> to vector<1x2x32xf32>
    tpu.vector_store %arg10[%c0_14, %c0_15, %c0_16], %40 {strides = array<i32>} : memref<8x2x32xf32, #tpu.memory_space<vmem>>, vector<1x2x32xf32>,
    %41 = vector.extract_strided_slice %6 {offsets = [2, 0], sizes = [2, 128], strides = [1, 1]} : vector<16x128xf32> to vector<2x128xf32>
    %cst_17 = arith.constant dense<0.000000e+00> : vector<2x128xf32>
    %42 = tpu.matmul %37, %7, %cst_17 {dimension_numbers = #tpu.dot_dimension_numbers<[1], [0], [0], [1], [0, 0, 1, 1], [], []>} : vector<2x32xf32>, vector<32x128xf32>, vector<2x128xf32> -> vector<2x128xf32>
    %43 = arith.addf %41, %42 : vector<2x128xf32>
    %44 = vector.extract_strided_slice %43 {offsets = [0, 0], sizes = [2, 32], strides = [1, 1]} : vector<2x128xf32> to vector<2x32xf32>
    %45 = arith.negf %44 : vector<2x32xf32>
    %46 = math.exp %45 : vector<2x32xf32>
    %cst_18 = arith.constant 1.000000e+00 : f32
    %47 = vector.broadcast %cst_18 : f32 to vector<2x32xf32>
    %48 = arith.addf %47, %46 : vector<2x32xf32>
    %49 = arith.divf %47, %48 : vector<2x32xf32>
    %50 = vector.extract_strided_slice %43 {offsets = [0, 32], sizes = [2, 32], strides = [1, 1]} : vector<2x128xf32> to vector<2x32xf32>
    %51 = arith.negf %50 : vector<2x32xf32>
    %52 = math.exp %51 : vector<2x32xf32>
    %cst_19 = arith.constant 1.000000e+00 : f32
    %53 = vector.broadcast %cst_19 : f32 to vector<2x32xf32>
    %54 = arith.addf %53, %52 : vector<2x32xf32>
    %55 = arith.divf %53, %54 : vector<2x32xf32>
    %56 = vector.extract_strided_slice %43 {offsets = [0, 64], sizes = [2, 32], strides = [1, 1]} : vector<2x128xf32> to vector<2x32xf32>
    %57 = math.tanh %56 : vector<2x32xf32>
    %58 = vector.extract_strided_slice %43 {offsets = [0, 96], sizes = [2, 32], strides = [1, 1]} : vector<2x128xf32> to vector<2x32xf32>
    %59 = arith.negf %58 : vector<2x32xf32>
    %60 = math.exp %59 : vector<2x32xf32>
    %cst_20 = arith.constant 1.000000e+00 : f32
    %61 = vector.broadcast %cst_20 : f32 to vector<2x32xf32>
    %62 = arith.addf %61, %60 : vector<2x32xf32>
    %63 = arith.divf %61, %62 : vector<2x32xf32>
    %64 = arith.mulf %55, %35 : vector<2x32xf32>
    %65 = arith.mulf %49, %57 : vector<2x32xf32>
    %66 = arith.addf %64, %65 : vector<2x32xf32>
    %67 = math.tanh %66 : vector<2x32xf32>
    %68 = arith.mulf %63, %67 : vector<2x32xf32>
    %c1 = arith.constant 1 : index
    %c0_21 = arith.constant 0 : index
    %c0_22 = arith.constant 0 : index
    %69 = vector.load %arg10[%c1, %c0_21, %c0_22] : memref<8x2x32xf32, #tpu.memory_space<vmem>>, vector<1x2x32xf32>
    %70 = vector.shape_cast %69 : vector<1x2x32xf32> to vector<2x32xf32>
    %71 = vector.shape_cast %68 : vector<2x32xf32> to vector<1x2x32xf32>
    tpu.vector_store %arg10[%c1, %c0_21, %c0_22], %71 {strides = array<i32>} : memref<8x2x32xf32, #tpu.memory_space<vmem>>, vector<1x2x32xf32>,
    %72 = vector.extract_strided_slice %6 {offsets = [4, 0], sizes = [2, 128], strides = [1, 1]} : vector<16x128xf32> to vector<2x128xf32>
    %cst_23 = arith.constant dense<0.000000e+00> : vector<2x128xf32>
    %73 = tpu.matmul %68, %7, %cst_23 {dimension_numbers = #tpu.dot_dimension_numbers<[1], [0], [0], [1], [0, 0, 1, 1], [], []>} : vector<2x32xf32>, vector<32x128xf32>, vector<2x128xf32> -> vector<2x128xf32>
    %74 = arith.addf %72, %73 : vector<2x128xf32>
    %75 = vector.extract_strided_slice %74 {offsets = [0, 0], sizes = [2, 32], strides = [1, 1]} : vector<2x128xf32> to vector<2x32xf32>
    %76 = arith.negf %75 : vector<2x32xf32>
    %77 = math.exp %76 : vector<2x32xf32>
    %cst_24 = arith.constant 1.000000e+00 : f32
    %78 = vector.broadcast %cst_24 : f32 to vector<2x32xf32>
    %79 = arith.addf %78, %77 : vector<2x32xf32>
    %80 = arith.divf %78, %79 : vector<2x32xf32>
    %81 = vector.extract_strided_slice %74 {offsets = [0, 32], sizes = [2, 32], strides = [1, 1]} : vector<2x128xf32> to vector<2x32xf32>
    %82 = arith.negf %81 : vector<2x32xf32>
    %83 = math.exp %82 : vector<2x32xf32>
    %cst_25 = arith.constant 1.000000e+00 : f32
    %84 = vector.broadcast %cst_25 : f32 to vector<2x32xf32>
    %85 = arith.addf %84, %83 : vector<2x32xf32>
    %86 = arith.divf %84, %85 : vector<2x32xf32>
    %87 = vector.extract_strided_slice %74 {offsets = [0, 64], sizes = [2, 32], strides = [1, 1]} : vector<2x128xf32> to vector<2x32xf32>
    %88 = math.tanh %87 : vector<2x32xf32>
    %89 = vector.extract_strided_slice %74 {offsets = [0, 96], sizes = [2, 32], strides = [1, 1]} : vector<2x128xf32> to vector<2x32xf32>
    %90 = arith.negf %89 : vector<2x32xf32>
    %91 = math.exp %90 : vector<2x32xf32>
    %cst_26 = arith.constant 1.000000e+00 : f32
    %92 = vector.broadcast %cst_26 : f32 to vector<2x32xf32>
    %93 = arith.addf %92, %91 : vector<2x32xf32>
    %94 = arith.divf %92, %93 : vector<2x32xf32>
    %95 = arith.mulf %86, %66 : vector<2x32xf32>
    %96 = arith.mulf %80, %88 : vector<2x32xf32>
    %97 = arith.addf %95, %96 : vector<2x32xf32>
    %98 = math.tanh %97 : vector<2x32xf32>
    %99 = arith.mulf %94, %98 : vector<2x32xf32>
    %c2 = arith.constant 2 : index
    %c0_27 = arith.constant 0 : index
    %c0_28 = arith.constant 0 : index
    %100 = vector.load %arg10[%c2, %c0_27, %c0_28] : memref<8x2x32xf32, #tpu.memory_space<vmem>>, vector<1x2x32xf32>
    %101 = vector.shape_cast %100 : vector<1x2x32xf32> to vector<2x32xf32>
    %102 = vector.shape_cast %99 : vector<2x32xf32> to vector<1x2x32xf32>
    tpu.vector_store %arg10[%c2, %c0_27, %c0_28], %102 {strides = array<i32>} : memref<8x2x32xf32, #tpu.memory_space<vmem>>, vector<1x2x32xf32>,
    %103 = vector.extract_strided_slice %6 {offsets = [6, 0], sizes = [2, 128], strides = [1, 1]} : vector<16x128xf32> to vector<2x128xf32>
    %cst_29 = arith.constant dense<0.000000e+00> : vector<2x128xf32>
    %104 = tpu.matmul %99, %7, %cst_29 {dimension_numbers = #tpu.dot_dimension_numbers<[1], [0], [0], [1], [0, 0, 1, 1], [], []>} : vector<2x32xf32>, vector<32x128xf32>, vector<2x128xf32> -> vector<2x128xf32>
    %105 = arith.addf %103, %104 : vector<2x128xf32>
    %106 = vector.extract_strided_slice %105 {offsets = [0, 0], sizes = [2, 32], strides = [1, 1]} : vector<2x128xf32> to vector<2x32xf32>
    %107 = arith.negf %106 : vector<2x32xf32>
    %108 = math.exp %107 : vector<2x32xf32>
    %cst_30 = arith.constant 1.000000e+00 : f32
    %109 = vector.broadcast %cst_30 : f32 to vector<2x32xf32>
    %110 = arith.addf %109, %108 : vector<2x32xf32>
    %111 = arith.divf %109, %110 : vector<2x32xf32>
    %112 = vector.extract_strided_slice %105 {offsets = [0, 32], sizes = [2, 32], strides = [1, 1]} : vector<2x128xf32> to vector<2x32xf32>
    %113 = arith.negf %112 : vector<2x32xf32>
    %114 = math.exp %113 : vector<2x32xf32>
    %cst_31 = arith.constant 1.000000e+00 : f32
    %115 = vector.broadcast %cst_31 : f32 to vector<2x32xf32>
    %116 = arith.addf %115, %114 : vector<2x32xf32>
    %117 = arith.divf %115, %116 : vector<2x32xf32>
    %118 = vector.extract_strided_slice %105 {offsets = [0, 64], sizes = [2, 32], strides = [1, 1]} : vector<2x128xf32> to vector<2x32xf32>
    %119 = math.tanh %118 : vector<2x32xf32>
    %120 = vector.extract_strided_slice %105 {offsets = [0, 96], sizes = [2, 32], strides = [1, 1]} : vector<2x128xf32> to vector<2x32xf32>
    %121 = arith.negf %120 : vector<2x32xf32>
    %122 = math.exp %121 : vector<2x32xf32>
    %cst_32 = arith.constant 1.000000e+00 : f32
    %123 = vector.broadcast %cst_32 : f32 to vector<2x32xf32>
    %124 = arith.addf %123, %122 : vector<2x32xf32>
    %125 = arith.divf %123, %124 : vector<2x32xf32>
    %126 = arith.mulf %117, %97 : vector<2x32xf32>
    %127 = arith.mulf %111, %119 : vector<2x32xf32>
    %128 = arith.addf %126, %127 : vector<2x32xf32>
    %129 = math.tanh %128 : vector<2x32xf32>
    %130 = arith.mulf %125, %129 : vector<2x32xf32>
    %c3 = arith.constant 3 : index
    %c0_33 = arith.constant 0 : index
    %c0_34 = arith.constant 0 : index
    %131 = vector.load %arg10[%c3, %c0_33, %c0_34] : memref<8x2x32xf32, #tpu.memory_space<vmem>>, vector<1x2x32xf32>
    %132 = vector.shape_cast %131 : vector<1x2x32xf32> to vector<2x32xf32>
    %133 = vector.shape_cast %130 : vector<2x32xf32> to vector<1x2x32xf32>
    tpu.vector_store %arg10[%c3, %c0_33, %c0_34], %133 {strides = array<i32>} : memref<8x2x32xf32, #tpu.memory_space<vmem>>, vector<1x2x32xf32>,
    %134 = vector.extract_strided_slice %6 {offsets = [8, 0], sizes = [2, 128], strides = [1, 1]} : vector<16x128xf32> to vector<2x128xf32>
    %cst_35 = arith.constant dense<0.000000e+00> : vector<2x128xf32>
    %135 = tpu.matmul %130, %7, %cst_35 {dimension_numbers = #tpu.dot_dimension_numbers<[1], [0], [0], [1], [0, 0, 1, 1], [], []>} : vector<2x32xf32>, vector<32x128xf32>, vector<2x128xf32> -> vector<2x128xf32>
    %136 = arith.addf %134, %135 : vector<2x128xf32>
    %137 = vector.extract_strided_slice %136 {offsets = [0, 0], sizes = [2, 32], strides = [1, 1]} : vector<2x128xf32> to vector<2x32xf32>
    %138 = arith.negf %137 : vector<2x32xf32>
    %139 = math.exp %138 : vector<2x32xf32>
    %cst_36 = arith.constant 1.000000e+00 : f32
    %140 = vector.broadcast %cst_36 : f32 to vector<2x32xf32>
    %141 = arith.addf %140, %139 : vector<2x32xf32>
    %142 = arith.divf %140, %141 : vector<2x32xf32>
    %143 = vector.extract_strided_slice %136 {offsets = [0, 32], sizes = [2, 32], strides = [1, 1]} : vector<2x128xf32> to vector<2x32xf32>
    %144 = arith.negf %143 : vector<2x32xf32>
    %145 = math.exp %144 : vector<2x32xf32>
    %cst_37 = arith.constant 1.000000e+00 : f32
    %146 = vector.broadcast %cst_37 : f32 to vector<2x32xf32>
    %147 = arith.addf %146, %145 : vector<2x32xf32>
    %148 = arith.divf %146, %147 : vector<2x32xf32>
    %149 = vector.extract_strided_slice %136 {offsets = [0, 64], sizes = [2, 32], strides = [1, 1]} : vector<2x128xf32> to vector<2x32xf32>
    %150 = math.tanh %149 : vector<2x32xf32>
    %151 = vector.extract_strided_slice %136 {offsets = [0, 96], sizes = [2, 32], strides = [1, 1]} : vector<2x128xf32> to vector<2x32xf32>
    %152 = arith.negf %151 : vector<2x32xf32>
    %153 = math.exp %152 : vector<2x32xf32>
    %cst_38 = arith.constant 1.000000e+00 : f32
    %154 = vector.broadcast %cst_38 : f32 to vector<2x32xf32>
    %155 = arith.addf %154, %153 : vector<2x32xf32>
    %156 = arith.divf %154, %155 : vector<2x32xf32>
    %157 = arith.mulf %148, %128 : vector<2x32xf32>
    %158 = arith.mulf %142, %150 : vector<2x32xf32>
    %159 = arith.addf %157, %158 : vector<2x32xf32>
    %160 = math.tanh %159 : vector<2x32xf32>
    %161 = arith.mulf %156, %160 : vector<2x32xf32>
    %c4 = arith.constant 4 : index
    %c0_39 = arith.constant 0 : index
    %c0_40 = arith.constant 0 : index
    %162 = vector.load %arg10[%c4, %c0_39, %c0_40] : memref<8x2x32xf32, #tpu.memory_space<vmem>>, vector<1x2x32xf32>
    %163 = vector.shape_cast %162 : vector<1x2x32xf32> to vector<2x32xf32>
    %164 = vector.shape_cast %161 : vector<2x32xf32> to vector<1x2x32xf32>
    tpu.vector_store %arg10[%c4, %c0_39, %c0_40], %164 {strides = array<i32>} : memref<8x2x32xf32, #tpu.memory_space<vmem>>, vector<1x2x32xf32>,
    %165 = vector.extract_strided_slice %6 {offsets = [10, 0], sizes = [2, 128], strides = [1, 1]} : vector<16x128xf32> to vector<2x128xf32>
    %cst_41 = arith.constant dense<0.000000e+00> : vector<2x128xf32>
    %166 = tpu.matmul %161, %7, %cst_41 {dimension_numbers = #tpu.dot_dimension_numbers<[1], [0], [0], [1], [0, 0, 1, 1], [], []>} : vector<2x32xf32>, vector<32x128xf32>, vector<2x128xf32> -> vector<2x128xf32>
    %167 = arith.addf %165, %166 : vector<2x128xf32>
    %168 = vector.extract_strided_slice %167 {offsets = [0, 0], sizes = [2, 32], strides = [1, 1]} : vector<2x128xf32> to vector<2x32xf32>
    %169 = arith.negf %168 : vector<2x32xf32>
    %170 = math.exp %169 : vector<2x32xf32>
    %cst_42 = arith.constant 1.000000e+00 : f32
    %171 = vector.broadcast %cst_42 : f32 to vector<2x32xf32>
    %172 = arith.addf %171, %170 : vector<2x32xf32>
    %173 = arith.divf %171, %172 : vector<2x32xf32>
    %174 = vector.extract_strided_slice %167 {offsets = [0, 32], sizes = [2, 32], strides = [1, 1]} : vector<2x128xf32> to vector<2x32xf32>
    %175 = arith.negf %174 : vector<2x32xf32>
    %176 = math.exp %175 : vector<2x32xf32>
    %cst_43 = arith.constant 1.000000e+00 : f32
    %177 = vector.broadcast %cst_43 : f32 to vector<2x32xf32>
    %178 = arith.addf %177, %176 : vector<2x32xf32>
    %179 = arith.divf %177, %178 : vector<2x32xf32>
    %180 = vector.extract_strided_slice %167 {offsets = [0, 64], sizes = [2, 32], strides = [1, 1]} : vector<2x128xf32> to vector<2x32xf32>
    %181 = math.tanh %180 : vector<2x32xf32>
    %182 = vector.extract_strided_slice %167 {offsets = [0, 96], sizes = [2, 32], strides = [1, 1]} : vector<2x128xf32> to vector<2x32xf32>
    %183 = arith.negf %182 : vector<2x32xf32>
    %184 = math.exp %183 : vector<2x32xf32>
    %cst_44 = arith.constant 1.000000e+00 : f32
    %185 = vector.broadcast %cst_44 : f32 to vector<2x32xf32>
    %186 = arith.addf %185, %184 : vector<2x32xf32>
    %187 = arith.divf %185, %186 : vector<2x32xf32>
    %188 = arith.mulf %179, %159 : vector<2x32xf32>
    %189 = arith.mulf %173, %181 : vector<2x32xf32>
    %190 = arith.addf %188, %189 : vector<2x32xf32>
    %191 = math.tanh %190 : vector<2x32xf32>
    %192 = arith.mulf %187, %191 : vector<2x32xf32>
    %c5 = arith.constant 5 : index
    %c0_45 = arith.constant 0 : index
    %c0_46 = arith.constant 0 : index
    %193 = vector.load %arg10[%c5, %c0_45, %c0_46] : memref<8x2x32xf32, #tpu.memory_space<vmem>>, vector<1x2x32xf32>
    %194 = vector.shape_cast %193 : vector<1x2x32xf32> to vector<2x32xf32>
    %195 = vector.shape_cast %192 : vector<2x32xf32> to vector<1x2x32xf32>
    tpu.vector_store %arg10[%c5, %c0_45, %c0_46], %195 {strides = array<i32>} : memref<8x2x32xf32, #tpu.memory_space<vmem>>, vector<1x2x32xf32>,
    %196 = vector.extract_strided_slice %6 {offsets = [12, 0], sizes = [2, 128], strides = [1, 1]} : vector<16x128xf32> to vector<2x128xf32>
    %cst_47 = arith.constant dense<0.000000e+00> : vector<2x128xf32>
    %197 = tpu.matmul %192, %7, %cst_47 {dimension_numbers = #tpu.dot_dimension_numbers<[1], [0], [0], [1], [0, 0, 1, 1], [], []>} : vector<2x32xf32>, vector<32x128xf32>, vector<2x128xf32> -> vector<2x128xf32>
    %198 = arith.addf %196, %197 : vector<2x128xf32>
    %199 = vector.extract_strided_slice %198 {offsets = [0, 0], sizes = [2, 32], strides = [1, 1]} : vector<2x128xf32> to vector<2x32xf32>
    %200 = arith.negf %199 : vector<2x32xf32>
    %201 = math.exp %200 : vector<2x32xf32>
    %cst_48 = arith.constant 1.000000e+00 : f32
    %202 = vector.broadcast %cst_48 : f32 to vector<2x32xf32>
    %203 = arith.addf %202, %201 : vector<2x32xf32>
    %204 = arith.divf %202, %203 : vector<2x32xf32>
    %205 = vector.extract_strided_slice %198 {offsets = [0, 32], sizes = [2, 32], strides = [1, 1]} : vector<2x128xf32> to vector<2x32xf32>
    %206 = arith.negf %205 : vector<2x32xf32>
    %207 = math.exp %206 : vector<2x32xf32>
    %cst_49 = arith.constant 1.000000e+00 : f32
    %208 = vector.broadcast %cst_49 : f32 to vector<2x32xf32>
    %209 = arith.addf %208, %207 : vector<2x32xf32>
    %210 = arith.divf %208, %209 : vector<2x32xf32>
    %211 = vector.extract_strided_slice %198 {offsets = [0, 64], sizes = [2, 32], strides = [1, 1]} : vector<2x128xf32> to vector<2x32xf32>
    %212 = math.tanh %211 : vector<2x32xf32>
    %213 = vector.extract_strided_slice %198 {offsets = [0, 96], sizes = [2, 32], strides = [1, 1]} : vector<2x128xf32> to vector<2x32xf32>
    %214 = arith.negf %213 : vector<2x32xf32>
    %215 = math.exp %214 : vector<2x32xf32>
    %cst_50 = arith.constant 1.000000e+00 : f32
    %216 = vector.broadcast %cst_50 : f32 to vector<2x32xf32>
    %217 = arith.addf %216, %215 : vector<2x32xf32>
    %218 = arith.divf %216, %217 : vector<2x32xf32>
    %219 = arith.mulf %210, %190 : vector<2x32xf32>
    %220 = arith.mulf %204, %212 : vector<2x32xf32>
    %221 = arith.addf %219, %220 : vector<2x32xf32>
    %222 = math.tanh %221 : vector<2x32xf32>
    %223 = arith.mulf %218, %222 : vector<2x32xf32>
    %c6 = arith.constant 6 : index
    %c0_51 = arith.constant 0 : index
    %c0_52 = arith.constant 0 : index
    %224 = vector.load %arg10[%c6, %c0_51, %c0_52] : memref<8x2x32xf32, #tpu.memory_space<vmem>>, vector<1x2x32xf32>
    %225 = vector.shape_cast %224 : vector<1x2x32xf32> to vector<2x32xf32>
    %226 = vector.shape_cast %223 : vector<2x32xf32> to vector<1x2x32xf32>
    tpu.vector_store %arg10[%c6, %c0_51, %c0_52], %226 {strides = array<i32>} : memref<8x2x32xf32, #tpu.memory_space<vmem>>, vector<1x2x32xf32>,
    %227 = vector.extract_strided_slice %6 {offsets = [14, 0], sizes = [2, 128], strides = [1, 1]} : vector<16x128xf32> to vector<2x128xf32>
    %cst_53 = arith.constant dense<0.000000e+00> : vector<2x128xf32>
    %228 = tpu.matmul %223, %7, %cst_53 {dimension_numbers = #tpu.dot_dimension_numbers<[1], [0], [0], [1], [0, 0, 1, 1], [], []>} : vector<2x32xf32>, vector<32x128xf32>, vector<2x128xf32> -> vector<2x128xf32>
    %229 = arith.addf %227, %228 : vector<2x128xf32>
    %230 = vector.extract_strided_slice %229 {offsets = [0, 0], sizes = [2, 32], strides = [1, 1]} : vector<2x128xf32> to vector<2x32xf32>
    %231 = arith.negf %230 : vector<2x32xf32>
    %232 = math.exp %231 : vector<2x32xf32>
    %cst_54 = arith.constant 1.000000e+00 : f32
    %233 = vector.broadcast %cst_54 : f32 to vector<2x32xf32>
    %234 = arith.addf %233, %232 : vector<2x32xf32>
    %235 = arith.divf %233, %234 : vector<2x32xf32>
    %236 = vector.extract_strided_slice %229 {offsets = [0, 32], sizes = [2, 32], strides = [1, 1]} : vector<2x128xf32> to vector<2x32xf32>
    %237 = arith.negf %236 : vector<2x32xf32>
    %238 = math.exp %237 : vector<2x32xf32>
    %cst_55 = arith.constant 1.000000e+00 : f32
    %239 = vector.broadcast %cst_55 : f32 to vector<2x32xf32>
    %240 = arith.addf %239, %238 : vector<2x32xf32>
    %241 = arith.divf %239, %240 : vector<2x32xf32>
    %242 = vector.extract_strided_slice %229 {offsets = [0, 64], sizes = [2, 32], strides = [1, 1]} : vector<2x128xf32> to vector<2x32xf32>
    %243 = math.tanh %242 : vector<2x32xf32>
    %244 = vector.extract_strided_slice %229 {offsets = [0, 96], sizes = [2, 32], strides = [1, 1]} : vector<2x128xf32> to vector<2x32xf32>
    %245 = arith.negf %244 : vector<2x32xf32>
    %246 = math.exp %245 : vector<2x32xf32>
    %cst_56 = arith.constant 1.000000e+00 : f32
    %247 = vector.broadcast %cst_56 : f32 to vector<2x32xf32>
    %248 = arith.addf %247, %246 : vector<2x32xf32>
    %249 = arith.divf %247, %248 : vector<2x32xf32>
    %250 = arith.mulf %241, %221 : vector<2x32xf32>
    %251 = arith.mulf %235, %243 : vector<2x32xf32>
    %252 = arith.addf %250, %251 : vector<2x32xf32>
    %253 = math.tanh %252 : vector<2x32xf32>
    %254 = arith.mulf %249, %253 : vector<2x32xf32>
    %c7 = arith.constant 7 : index
    %c0_57 = arith.constant 0 : index
    %c0_58 = arith.constant 0 : index
    %255 = vector.load %arg10[%c7, %c0_57, %c0_58] : memref<8x2x32xf32, #tpu.memory_space<vmem>>, vector<1x2x32xf32>
    %256 = vector.shape_cast %255 : vector<1x2x32xf32> to vector<2x32xf32>
    %257 = vector.shape_cast %254 : vector<2x32xf32> to vector<1x2x32xf32>
    tpu.vector_store %arg10[%c7, %c0_57, %c0_58], %257 {strides = array<i32>} : memref<8x2x32xf32, #tpu.memory_space<vmem>>, vector<1x2x32xf32>,
    %c0_59 = arith.constant 0 : index
    %c0_60 = arith.constant 0 : index
    %c0_61 = arith.constant 0 : index
    %258 = vector.load %arg10[%c0_59, %c0_60, %c0_61] : memref<8x2x32xf32, #tpu.memory_space<vmem>>, vector<8x2x32xf32>
    %259 = vector.shape_cast %258 : vector<8x2x32xf32> to vector<16x32xf32>
    %c0_62 = arith.constant 0 : index
    %c0_63 = arith.constant 0 : index
    %260 = vector.load %arg4[%c0_62, %c0_63] : memref<32x128xf32, #tpu.memory_space<vmem>>, vector<32x128xf32>
    %cst_64 = arith.constant dense<0.000000e+00> : vector<16x128xf32>
    %261 = tpu.matmul %259, %260, %cst_64 {dimension_numbers = #tpu.dot_dimension_numbers<[1], [0], [0], [1], [0, 0, 1, 1], [], []>} : vector<16x32xf32>, vector<32x128xf32>, vector<16x128xf32> -> vector<16x128xf32>
    %c0_65 = arith.constant 0 : index
    %c0_66 = arith.constant 0 : index
    %262 = vector.load %arg6[%c0_65, %c0_66] : memref<1x128xf32, #tpu.memory_space<vmem>>, vector<1x128xf32>
    %263 = vector.broadcast %262 : vector<1x128xf32> to vector<16x128xf32>
    %264 = arith.addf %261, %263 : vector<16x128xf32>
    %c0_67 = arith.constant 0 : index
    %c0_68 = arith.constant 0 : index
    %265 = vector.load %arg5[%c0_67, %c0_68] : memref<32x128xf32, #tpu.memory_space<vmem>>, vector<32x128xf32>
    %cst_69 = arith.constant 0.000000e+00 : f32
    %266 = vector.broadcast %cst_69 : f32 to vector<2x32xf32>
    %cst_70 = arith.constant 0.000000e+00 : f32
    %267 = vector.broadcast %cst_70 : f32 to vector<2x32xf32>
    %268 = vector.extract_strided_slice %264 {offsets = [0, 0], sizes = [2, 128], strides = [1, 1]} : vector<16x128xf32> to vector<2x128xf32>
    %cst_71 = arith.constant dense<0.000000e+00> : vector<2x128xf32>
    %269 = tpu.matmul %266, %265, %cst_71 {dimension_numbers = #tpu.dot_dimension_numbers<[1], [0], [0], [1], [0, 0, 1, 1], [], []>} : vector<2x32xf32>, vector<32x128xf32>, vector<2x128xf32> -> vector<2x128xf32>
    %270 = arith.addf %268, %269 : vector<2x128xf32>
    %271 = vector.extract_strided_slice %270 {offsets = [0, 0], sizes = [2, 32], strides = [1, 1]} : vector<2x128xf32> to vector<2x32xf32>
    %272 = arith.negf %271 : vector<2x32xf32>
    %273 = math.exp %272 : vector<2x32xf32>
    %cst_72 = arith.constant 1.000000e+00 : f32
    %274 = vector.broadcast %cst_72 : f32 to vector<2x32xf32>
    %275 = arith.addf %274, %273 : vector<2x32xf32>
    %276 = arith.divf %274, %275 : vector<2x32xf32>
    %277 = vector.extract_strided_slice %270 {offsets = [0, 32], sizes = [2, 32], strides = [1, 1]} : vector<2x128xf32> to vector<2x32xf32>
    %278 = arith.negf %277 : vector<2x32xf32>
    %279 = math.exp %278 : vector<2x32xf32>
    %cst_73 = arith.constant 1.000000e+00 : f32
    %280 = vector.broadcast %cst_73 : f32 to vector<2x32xf32>
    %281 = arith.addf %280, %279 : vector<2x32xf32>
    %282 = arith.divf %280, %281 : vector<2x32xf32>
    %283 = vector.extract_strided_slice %270 {offsets = [0, 64], sizes = [2, 32], strides = [1, 1]} : vector<2x128xf32> to vector<2x32xf32>
    %284 = math.tanh %283 : vector<2x32xf32>
    %285 = vector.extract_strided_slice %270 {offsets = [0, 96], sizes = [2, 32], strides = [1, 1]} : vector<2x128xf32> to vector<2x32xf32>
    %286 = arith.negf %285 : vector<2x32xf32>
    %287 = math.exp %286 : vector<2x32xf32>
    %cst_74 = arith.constant 1.000000e+00 : f32
    %288 = vector.broadcast %cst_74 : f32 to vector<2x32xf32>
    %289 = arith.addf %288, %287 : vector<2x32xf32>
    %290 = arith.divf %288, %289 : vector<2x32xf32>
    %291 = arith.mulf %282, %267 : vector<2x32xf32>
    %292 = arith.mulf %276, %284 : vector<2x32xf32>
    %293 = arith.addf %291, %292 : vector<2x32xf32>
    %294 = math.tanh %293 : vector<2x32xf32>
    %295 = arith.mulf %290, %294 : vector<2x32xf32>
    %296 = vector.extract_strided_slice %264 {offsets = [2, 0], sizes = [2, 128], strides = [1, 1]} : vector<16x128xf32> to vector<2x128xf32>
    %cst_75 = arith.constant dense<0.000000e+00> : vector<2x128xf32>
    %297 = tpu.matmul %295, %265, %cst_75 {dimension_numbers = #tpu.dot_dimension_numbers<[1], [0], [0], [1], [0, 0, 1, 1], [], []>} : vector<2x32xf32>, vector<32x128xf32>, vector<2x128xf32> -> vector<2x128xf32>
    %298 = arith.addf %296, %297 : vector<2x128xf32>
    %299 = vector.extract_strided_slice %298 {offsets = [0, 0], sizes = [2, 32], strides = [1, 1]} : vector<2x128xf32> to vector<2x32xf32>
    %300 = arith.negf %299 : vector<2x32xf32>
    %301 = math.exp %300 : vector<2x32xf32>
    %cst_76 = arith.constant 1.000000e+00 : f32
    %302 = vector.broadcast %cst_76 : f32 to vector<2x32xf32>
    %303 = arith.addf %302, %301 : vector<2x32xf32>
    %304 = arith.divf %302, %303 : vector<2x32xf32>
    %305 = vector.extract_strided_slice %298 {offsets = [0, 32], sizes = [2, 32], strides = [1, 1]} : vector<2x128xf32> to vector<2x32xf32>
    %306 = arith.negf %305 : vector<2x32xf32>
    %307 = math.exp %306 : vector<2x32xf32>
    %cst_77 = arith.constant 1.000000e+00 : f32
    %308 = vector.broadcast %cst_77 : f32 to vector<2x32xf32>
    %309 = arith.addf %308, %307 : vector<2x32xf32>
    %310 = arith.divf %308, %309 : vector<2x32xf32>
    %311 = vector.extract_strided_slice %298 {offsets = [0, 64], sizes = [2, 32], strides = [1, 1]} : vector<2x128xf32> to vector<2x32xf32>
    %312 = math.tanh %311 : vector<2x32xf32>
    %313 = vector.extract_strided_slice %298 {offsets = [0, 96], sizes = [2, 32], strides = [1, 1]} : vector<2x128xf32> to vector<2x32xf32>
    %314 = arith.negf %313 : vector<2x32xf32>
    %315 = math.exp %314 : vector<2x32xf32>
    %cst_78 = arith.constant 1.000000e+00 : f32
    %316 = vector.broadcast %cst_78 : f32 to vector<2x32xf32>
    %317 = arith.addf %316, %315 : vector<2x32xf32>
    %318 = arith.divf %316, %317 : vector<2x32xf32>
    %319 = arith.mulf %310, %293 : vector<2x32xf32>
    %320 = arith.mulf %304, %312 : vector<2x32xf32>
    %321 = arith.addf %319, %320 : vector<2x32xf32>
    %322 = math.tanh %321 : vector<2x32xf32>
    %323 = arith.mulf %318, %322 : vector<2x32xf32>
    %324 = vector.extract_strided_slice %264 {offsets = [4, 0], sizes = [2, 128], strides = [1, 1]} : vector<16x128xf32> to vector<2x128xf32>
    %cst_79 = arith.constant dense<0.000000e+00> : vector<2x128xf32>
    %325 = tpu.matmul %323, %265, %cst_79 {dimension_numbers = #tpu.dot_dimension_numbers<[1], [0], [0], [1], [0, 0, 1, 1], [], []>} : vector<2x32xf32>, vector<32x128xf32>, vector<2x128xf32> -> vector<2x128xf32>
    %326 = arith.addf %324, %325 : vector<2x128xf32>
    %327 = vector.extract_strided_slice %326 {offsets = [0, 0], sizes = [2, 32], strides = [1, 1]} : vector<2x128xf32> to vector<2x32xf32>
    %328 = arith.negf %327 : vector<2x32xf32>
    %329 = math.exp %328 : vector<2x32xf32>
    %cst_80 = arith.constant 1.000000e+00 : f32
    %330 = vector.broadcast %cst_80 : f32 to vector<2x32xf32>
    %331 = arith.addf %330, %329 : vector<2x32xf32>
    %332 = arith.divf %330, %331 : vector<2x32xf32>
    %333 = vector.extract_strided_slice %326 {offsets = [0, 32], sizes = [2, 32], strides = [1, 1]} : vector<2x128xf32> to vector<2x32xf32>
    %334 = arith.negf %333 : vector<2x32xf32>
    %335 = math.exp %334 : vector<2x32xf32>
    %cst_81 = arith.constant 1.000000e+00 : f32
    %336 = vector.broadcast %cst_81 : f32 to vector<2x32xf32>
    %337 = arith.addf %336, %335 : vector<2x32xf32>
    %338 = arith.divf %336, %337 : vector<2x32xf32>
    %339 = vector.extract_strided_slice %326 {offsets = [0, 64], sizes = [2, 32], strides = [1, 1]} : vector<2x128xf32> to vector<2x32xf32>
    %340 = math.tanh %339 : vector<2x32xf32>
    %341 = vector.extract_strided_slice %326 {offsets = [0, 96], sizes = [2, 32], strides = [1, 1]} : vector<2x128xf32> to vector<2x32xf32>
    %342 = arith.negf %341 : vector<2x32xf32>
    %343 = math.exp %342 : vector<2x32xf32>
    %cst_82 = arith.constant 1.000000e+00 : f32
    %344 = vector.broadcast %cst_82 : f32 to vector<2x32xf32>
    %345 = arith.addf %344, %343 : vector<2x32xf32>
    %346 = arith.divf %344, %345 : vector<2x32xf32>
    %347 = arith.mulf %338, %321 : vector<2x32xf32>
    %348 = arith.mulf %332, %340 : vector<2x32xf32>
    %349 = arith.addf %347, %348 : vector<2x32xf32>
    %350 = math.tanh %349 : vector<2x32xf32>
    %351 = arith.mulf %346, %350 : vector<2x32xf32>
    %352 = vector.extract_strided_slice %264 {offsets = [6, 0], sizes = [2, 128], strides = [1, 1]} : vector<16x128xf32> to vector<2x128xf32>
    %cst_83 = arith.constant dense<0.000000e+00> : vector<2x128xf32>
    %353 = tpu.matmul %351, %265, %cst_83 {dimension_numbers = #tpu.dot_dimension_numbers<[1], [0], [0], [1], [0, 0, 1, 1], [], []>} : vector<2x32xf32>, vector<32x128xf32>, vector<2x128xf32> -> vector<2x128xf32>
    %354 = arith.addf %352, %353 : vector<2x128xf32>
    %355 = vector.extract_strided_slice %354 {offsets = [0, 0], sizes = [2, 32], strides = [1, 1]} : vector<2x128xf32> to vector<2x32xf32>
    %356 = arith.negf %355 : vector<2x32xf32>
    %357 = math.exp %356 : vector<2x32xf32>
    %cst_84 = arith.constant 1.000000e+00 : f32
    %358 = vector.broadcast %cst_84 : f32 to vector<2x32xf32>
    %359 = arith.addf %358, %357 : vector<2x32xf32>
    %360 = arith.divf %358, %359 : vector<2x32xf32>
    %361 = vector.extract_strided_slice %354 {offsets = [0, 32], sizes = [2, 32], strides = [1, 1]} : vector<2x128xf32> to vector<2x32xf32>
    %362 = arith.negf %361 : vector<2x32xf32>
    %363 = math.exp %362 : vector<2x32xf32>
    %cst_85 = arith.constant 1.000000e+00 : f32
    %364 = vector.broadcast %cst_85 : f32 to vector<2x32xf32>
    %365 = arith.addf %364, %363 : vector<2x32xf32>
    %366 = arith.divf %364, %365 : vector<2x32xf32>
    %367 = vector.extract_strided_slice %354 {offsets = [0, 64], sizes = [2, 32], strides = [1, 1]} : vector<2x128xf32> to vector<2x32xf32>
    %368 = math.tanh %367 : vector<2x32xf32>
    %369 = vector.extract_strided_slice %354 {offsets = [0, 96], sizes = [2, 32], strides = [1, 1]} : vector<2x128xf32> to vector<2x32xf32>
    %370 = arith.negf %369 : vector<2x32xf32>
    %371 = math.exp %370 : vector<2x32xf32>
    %cst_86 = arith.constant 1.000000e+00 : f32
    %372 = vector.broadcast %cst_86 : f32 to vector<2x32xf32>
    %373 = arith.addf %372, %371 : vector<2x32xf32>
    %374 = arith.divf %372, %373 : vector<2x32xf32>
    %375 = arith.mulf %366, %349 : vector<2x32xf32>
    %376 = arith.mulf %360, %368 : vector<2x32xf32>
    %377 = arith.addf %375, %376 : vector<2x32xf32>
    %378 = math.tanh %377 : vector<2x32xf32>
    %379 = arith.mulf %374, %378 : vector<2x32xf32>
    %380 = vector.extract_strided_slice %264 {offsets = [8, 0], sizes = [2, 128], strides = [1, 1]} : vector<16x128xf32> to vector<2x128xf32>
    %cst_87 = arith.constant dense<0.000000e+00> : vector<2x128xf32>
    %381 = tpu.matmul %379, %265, %cst_87 {dimension_numbers = #tpu.dot_dimension_numbers<[1], [0], [0], [1], [0, 0, 1, 1], [], []>} : vector<2x32xf32>, vector<32x128xf32>, vector<2x128xf32> -> vector<2x128xf32>
    %382 = arith.addf %380, %381 : vector<2x128xf32>
    %383 = vector.extract_strided_slice %382 {offsets = [0, 0], sizes = [2, 32], strides = [1, 1]} : vector<2x128xf32> to vector<2x32xf32>
    %384 = arith.negf %383 : vector<2x32xf32>
    %385 = math.exp %384 : vector<2x32xf32>
    %cst_88 = arith.constant 1.000000e+00 : f32
    %386 = vector.broadcast %cst_88 : f32 to vector<2x32xf32>
    %387 = arith.addf %386, %385 : vector<2x32xf32>
    %388 = arith.divf %386, %387 : vector<2x32xf32>
    %389 = vector.extract_strided_slice %382 {offsets = [0, 32], sizes = [2, 32], strides = [1, 1]} : vector<2x128xf32> to vector<2x32xf32>
    %390 = arith.negf %389 : vector<2x32xf32>
    %391 = math.exp %390 : vector<2x32xf32>
    %cst_89 = arith.constant 1.000000e+00 : f32
    %392 = vector.broadcast %cst_89 : f32 to vector<2x32xf32>
    %393 = arith.addf %392, %391 : vector<2x32xf32>
    %394 = arith.divf %392, %393 : vector<2x32xf32>
    %395 = vector.extract_strided_slice %382 {offsets = [0, 64], sizes = [2, 32], strides = [1, 1]} : vector<2x128xf32> to vector<2x32xf32>
    %396 = math.tanh %395 : vector<2x32xf32>
    %397 = vector.extract_strided_slice %382 {offsets = [0, 96], sizes = [2, 32], strides = [1, 1]} : vector<2x128xf32> to vector<2x32xf32>
    %398 = arith.negf %397 : vector<2x32xf32>
    %399 = math.exp %398 : vector<2x32xf32>
    %cst_90 = arith.constant 1.000000e+00 : f32
    %400 = vector.broadcast %cst_90 : f32 to vector<2x32xf32>
    %401 = arith.addf %400, %399 : vector<2x32xf32>
    %402 = arith.divf %400, %401 : vector<2x32xf32>
    %403 = arith.mulf %394, %377 : vector<2x32xf32>
    %404 = arith.mulf %388, %396 : vector<2x32xf32>
    %405 = arith.addf %403, %404 : vector<2x32xf32>
    %406 = math.tanh %405 : vector<2x32xf32>
    %407 = arith.mulf %402, %406 : vector<2x32xf32>
    %408 = vector.extract_strided_slice %264 {offsets = [10, 0], sizes = [2, 128], strides = [1, 1]} : vector<16x128xf32> to vector<2x128xf32>
    %cst_91 = arith.constant dense<0.000000e+00> : vector<2x128xf32>
    %409 = tpu.matmul %407, %265, %cst_91 {dimension_numbers = #tpu.dot_dimension_numbers<[1], [0], [0], [1], [0, 0, 1, 1], [], []>} : vector<2x32xf32>, vector<32x128xf32>, vector<2x128xf32> -> vector<2x128xf32>
    %410 = arith.addf %408, %409 : vector<2x128xf32>
    %411 = vector.extract_strided_slice %410 {offsets = [0, 0], sizes = [2, 32], strides = [1, 1]} : vector<2x128xf32> to vector<2x32xf32>
    %412 = arith.negf %411 : vector<2x32xf32>
    %413 = math.exp %412 : vector<2x32xf32>
    %cst_92 = arith.constant 1.000000e+00 : f32
    %414 = vector.broadcast %cst_92 : f32 to vector<2x32xf32>
    %415 = arith.addf %414, %413 : vector<2x32xf32>
    %416 = arith.divf %414, %415 : vector<2x32xf32>
    %417 = vector.extract_strided_slice %410 {offsets = [0, 32], sizes = [2, 32], strides = [1, 1]} : vector<2x128xf32> to vector<2x32xf32>
    %418 = arith.negf %417 : vector<2x32xf32>
    %419 = math.exp %418 : vector<2x32xf32>
    %cst_93 = arith.constant 1.000000e+00 : f32
    %420 = vector.broadcast %cst_93 : f32 to vector<2x32xf32>
    %421 = arith.addf %420, %419 : vector<2x32xf32>
    %422 = arith.divf %420, %421 : vector<2x32xf32>
    %423 = vector.extract_strided_slice %410 {offsets = [0, 64], sizes = [2, 32], strides = [1, 1]} : vector<2x128xf32> to vector<2x32xf32>
    %424 = math.tanh %423 : vector<2x32xf32>
    %425 = vector.extract_strided_slice %410 {offsets = [0, 96], sizes = [2, 32], strides = [1, 1]} : vector<2x128xf32> to vector<2x32xf32>
    %426 = arith.negf %425 : vector<2x32xf32>
    %427 = math.exp %426 : vector<2x32xf32>
    %cst_94 = arith.constant 1.000000e+00 : f32
    %428 = vector.broadcast %cst_94 : f32 to vector<2x32xf32>
    %429 = arith.addf %428, %427 : vector<2x32xf32>
    %430 = arith.divf %428, %429 : vector<2x32xf32>
    %431 = arith.mulf %422, %405 : vector<2x32xf32>
    %432 = arith.mulf %416, %424 : vector<2x32xf32>
    %433 = arith.addf %431, %432 : vector<2x32xf32>
    %434 = math.tanh %433 : vector<2x32xf32>
    %435 = arith.mulf %430, %434 : vector<2x32xf32>
    %436 = vector.extract_strided_slice %264 {offsets = [12, 0], sizes = [2, 128], strides = [1, 1]} : vector<16x128xf32> to vector<2x128xf32>
    %cst_95 = arith.constant dense<0.000000e+00> : vector<2x128xf32>
    %437 = tpu.matmul %435, %265, %cst_95 {dimension_numbers = #tpu.dot_dimension_numbers<[1], [0], [0], [1], [0, 0, 1, 1], [], []>} : vector<2x32xf32>, vector<32x128xf32>, vector<2x128xf32> -> vector<2x128xf32>
    %438 = arith.addf %436, %437 : vector<2x128xf32>
    %439 = vector.extract_strided_slice %438 {offsets = [0, 0], sizes = [2, 32], strides = [1, 1]} : vector<2x128xf32> to vector<2x32xf32>
    %440 = arith.negf %439 : vector<2x32xf32>
    %441 = math.exp %440 : vector<2x32xf32>
    %cst_96 = arith.constant 1.000000e+00 : f32
    %442 = vector.broadcast %cst_96 : f32 to vector<2x32xf32>
    %443 = arith.addf %442, %441 : vector<2x32xf32>
    %444 = arith.divf %442, %443 : vector<2x32xf32>
    %445 = vector.extract_strided_slice %438 {offsets = [0, 32], sizes = [2, 32], strides = [1, 1]} : vector<2x128xf32> to vector<2x32xf32>
    %446 = arith.negf %445 : vector<2x32xf32>
    %447 = math.exp %446 : vector<2x32xf32>
    %cst_97 = arith.constant 1.000000e+00 : f32
    %448 = vector.broadcast %cst_97 : f32 to vector<2x32xf32>
    %449 = arith.addf %448, %447 : vector<2x32xf32>
    %450 = arith.divf %448, %449 : vector<2x32xf32>
    %451 = vector.extract_strided_slice %438 {offsets = [0, 64], sizes = [2, 32], strides = [1, 1]} : vector<2x128xf32> to vector<2x32xf32>
    %452 = math.tanh %451 : vector<2x32xf32>
    %453 = vector.extract_strided_slice %438 {offsets = [0, 96], sizes = [2, 32], strides = [1, 1]} : vector<2x128xf32> to vector<2x32xf32>
    %454 = arith.negf %453 : vector<2x32xf32>
    %455 = math.exp %454 : vector<2x32xf32>
    %cst_98 = arith.constant 1.000000e+00 : f32
    %456 = vector.broadcast %cst_98 : f32 to vector<2x32xf32>
    %457 = arith.addf %456, %455 : vector<2x32xf32>
    %458 = arith.divf %456, %457 : vector<2x32xf32>
    %459 = arith.mulf %450, %433 : vector<2x32xf32>
    %460 = arith.mulf %444, %452 : vector<2x32xf32>
    %461 = arith.addf %459, %460 : vector<2x32xf32>
    %462 = math.tanh %461 : vector<2x32xf32>
    %463 = arith.mulf %458, %462 : vector<2x32xf32>
    %464 = vector.extract_strided_slice %264 {offsets = [14, 0], sizes = [2, 128], strides = [1, 1]} : vector<16x128xf32> to vector<2x128xf32>
    %cst_99 = arith.constant dense<0.000000e+00> : vector<2x128xf32>
    %465 = tpu.matmul %463, %265, %cst_99 {dimension_numbers = #tpu.dot_dimension_numbers<[1], [0], [0], [1], [0, 0, 1, 1], [], []>} : vector<2x32xf32>, vector<32x128xf32>, vector<2x128xf32> -> vector<2x128xf32>
    %466 = arith.addf %464, %465 : vector<2x128xf32>
    %467 = vector.extract_strided_slice %466 {offsets = [0, 0], sizes = [2, 32], strides = [1, 1]} : vector<2x128xf32> to vector<2x32xf32>
    %468 = arith.negf %467 : vector<2x32xf32>
    %469 = math.exp %468 : vector<2x32xf32>
    %cst_100 = arith.constant 1.000000e+00 : f32
    %470 = vector.broadcast %cst_100 : f32 to vector<2x32xf32>
    %471 = arith.addf %470, %469 : vector<2x32xf32>
    %472 = arith.divf %470, %471 : vector<2x32xf32>
    %473 = vector.extract_strided_slice %466 {offsets = [0, 32], sizes = [2, 32], strides = [1, 1]} : vector<2x128xf32> to vector<2x32xf32>
    %474 = arith.negf %473 : vector<2x32xf32>
    %475 = math.exp %474 : vector<2x32xf32>
    %cst_101 = arith.constant 1.000000e+00 : f32
    %476 = vector.broadcast %cst_101 : f32 to vector<2x32xf32>
    %477 = arith.addf %476, %475 : vector<2x32xf32>
    %478 = arith.divf %476, %477 : vector<2x32xf32>
    %479 = vector.extract_strided_slice %466 {offsets = [0, 64], sizes = [2, 32], strides = [1, 1]} : vector<2x128xf32> to vector<2x32xf32>
    %480 = math.tanh %479 : vector<2x32xf32>
    %481 = vector.extract_strided_slice %466 {offsets = [0, 96], sizes = [2, 32], strides = [1, 1]} : vector<2x128xf32> to vector<2x32xf32>
    %482 = arith.negf %481 : vector<2x32xf32>
    %483 = math.exp %482 : vector<2x32xf32>
    %cst_102 = arith.constant 1.000000e+00 : f32
    %484 = vector.broadcast %cst_102 : f32 to vector<2x32xf32>
    %485 = arith.addf %484, %483 : vector<2x32xf32>
    %486 = arith.divf %484, %485 : vector<2x32xf32>
    %487 = arith.mulf %478, %461 : vector<2x32xf32>
    %488 = arith.mulf %472, %480 : vector<2x32xf32>
    %489 = arith.addf %487, %488 : vector<2x32xf32>
    %490 = math.tanh %489 : vector<2x32xf32>
    %491 = arith.mulf %486, %490 : vector<2x32xf32>
    %c0_103 = arith.constant 0 : index
    %c0_104 = arith.constant 0 : index
    %492 = vector.load %arg7[%c0_103, %c0_104] : memref<1x32xf32, #tpu.memory_space<vmem>>, vector<1x32xf32>
    %493 = vector.broadcast %492 : vector<1x32xf32> to vector<2x32xf32>
    %494 = arith.mulf %491, %493 : vector<2x32xf32>
    %cst_105 = arith.constant dense<0.000000e+00> : vector<2xf32>
    %495 = vector.multi_reduction <add>, %494, %cst_105 [1] : vector<2x32xf32> to vector<2xf32>
    %496 = vector.shape_cast %495 : vector<2xf32> to vector<2x1xf32>
    %c0_106 = arith.constant 0 : index
    %c0_107 = arith.constant 0 : index
    %497 = vector.load %arg8[%c0_106, %c0_107] : memref<1x1xf32, #tpu.memory_space<vmem>>, vector<1x1xf32>
    %498 = vector.broadcast %497 : vector<1x1xf32> to vector<2x1xf32>
    %499 = arith.addf %496, %498 : vector<2x1xf32>
    %cst_108 = arith.constant 0.000000e+00 : f32
    %500 = vector.broadcast %cst_108 : f32 to vector<2x1xf32>
    %501 = arith.maximumf %499, %500 : vector<2x1xf32>
    %c0_109 = arith.constant 0 : index
    %c0_110 = arith.constant 0 : index
    %502 = vector.load %arg9[%c0_109, %c0_110] : memref<2x1xf32, #tpu.memory_space<vmem>>, vector<2x1xf32>
    tpu.vector_store %arg9[%c0_109, %c0_110], %501 {strides = array<i32>} : memref<2x1xf32, #tpu.memory_space<vmem>>, vector<2x1xf32>,
    return
  }
}

</mosaic_0001>

<llo_original>
// kernel: tpu_custom_call.1
$region0: #{tpu_custom_call.1}
  #allocation0 [shape = 'u32[]', space=smem, size = 0x4, offset = 0x4, fixed_abs, tag = 'smem constant byte address 0x4 - core index']
  #allocation1 [shape = 'u32[72,128]{1,0:T(1,128)}', space=vmem, size = 0x9000, scoped, tag = 'internal scratch']
  #allocation2 [shape = 'f32[8,2,32]{2,1,0:T(2,128)}', space=vmem, size = 0x2000, scoped, tag = 'scratch operand']
  #allocation3 [shape = 'f32[1,1]{1,0:T(1,128)S(1)}', space=vmem, size = 0x200, scoped, tag = 'scoped memory for tpu_custom_call.1']
  %s0 = inlined_call_operand.hbm [shape: f32[8,2,8], index: 0, kind: input, shape index: {}]
  %s1 = inlined_call_operand.hbm [shape: f32[8,128], index: 1, kind: input, shape index: {}]
  %s2 = inlined_call_operand.hbm [shape: f32[32,128], index: 2, kind: input, shape index: {}]
  %s3 = inlined_call_operand.vmem [shape: f32[1,128], index: 3, kind: input, shape index: {}]
  %s4 = inlined_call_operand.hbm [shape: f32[32,128], index: 4, kind: input, shape index: {}]
  %s5 = inlined_call_operand.hbm [shape: f32[32,128], index: 5, kind: input, shape index: {}]
  %s6 = inlined_call_operand.vmem [shape: f32[1,128], index: 6, kind: input, shape index: {}]
  %s7 = inlined_call_operand.vmem [shape: f32[1,32], index: 7, kind: input, shape index: {}]
  %s8 = inlined_call_operand.<no memory space> [shape: f32[1,1], index: 8, kind: input, shape index: {}]
  %s9 = inlined_call_operand.vmem [shape: f32[2,1], index: 9, kind: output, shape index: {}]
  %s10 = sld [smem:[#allocation0]]
  $region66: #{tpu_custom_call.1} parent=0
    _
  %s12 = ssub.s32 1, %s10
  %s13 = scalar_select 0, %s12, %s10
  %v14 = vstv %s8
  %15 = vst [vmem:[#allocation3] sm:$0x1] %v14
  $region1: #{tpu_custom_call.1} parent=0
    #allocation4 [shape = 'u8[8192]{0}', space=vmem, size = 0x2000, scoped, tag = 'input window, operand 0, single buffered']
    #allocation5 [shape = 's32[1]{0}', space=sflag, size = 0x4, scoped, tag = 'scoped memory for tpu_custom_call.1']
    #allocation6 [shape = 'u8[4096]{0}', space=vmem, size = 0x1000, scoped, tag = 'input window, operand 1, single buffered']
    #allocation7 [shape = 's32[1]{0}', space=sflag, size = 0x4, scoped, tag = 'scoped memory for tpu_custom_call.1']
    #allocation8 [shape = 'u8[16384]{0}', space=vmem, size = 0x4000, scoped, tag = 'input window, operand 2, single buffered']
    #allocation9 [shape = 'u8[16384]{0}', space=vmem, size = 0x4000, scoped, tag = 'input window, operand 4, single buffered']
    #allocation10 [shape = 's32[1]{0}', space=sflag, size = 0x4, scoped, tag = 'scoped memory for tpu_custom_call.1']
    #allocation11 [shape = 'u8[16384]{0}', space=vmem, size = 0x4000, scoped, tag = 'input window, operand 5, single buffered']
    %16 = vsyncpa [#allocation5], 0
    %17 = vsyncpa [#allocation7], 0
    %18 = vsyncpa [#allocation10], 0
    // Predicated region
    $region2: #{tpu_custom_call.1} parent=1 // pred_check
      _
    $region3: #{tpu_custom_call.1} parent=1 // pred_check_branch
      %20 = sbr.rel (0) target = $region5
    $region4: #{tpu_custom_call.1} parent=1 // pred_region
      %22 = vsyncadd [#allocation5], 0
      %s23 = sshll.u32 %s0, 4
      %s24 = int_to_ptr.hbm [resolvable:$true] %s23
      %s25 = sshll.u32 [#allocation4], 4
      %s26 = int_to_ptr.vmem [resolvable:$true] %s25
      %31 = dma.hbm_to_vmem [thread:$0]  %s24, 256, %s26, [#allocation5], 32, 32, 2
    $region5: #{tpu_custom_call.1} parent=1 // pred_fallthru
      _
    // Predicated region
    $region6: #{tpu_custom_call.1} parent=1 // pred_check
      _
    $region7: #{tpu_custom_call.1} parent=1 // pred_check_branch
      %33 = sbr.rel (0) target = $region9
    $region8: #{tpu_custom_call.1} parent=1 // pred_region
      %35 = vsyncadd [#allocation7], 0
      %s37 = sshll.u32 %s1, 4
      %s38 = int_to_ptr.hbm [resolvable:$true] %s37
      %s39 = sshll.u32 [#allocation6], 4
      %s40 = int_to_ptr.vmem [resolvable:$true] %s39
      %42 = dma.hbm_to_vmem [thread:$0]  %s38, 128, %s40, [#allocation7]
    $region9: #{tpu_custom_call.1} parent=1 // pred_fallthru
      _
    // Predicated region
    $region10: #{tpu_custom_call.1} parent=1 // pred_check
      _
    $region11: #{tpu_custom_call.1} parent=1 // pred_check_branch
      %44 = sbr.rel (0) target = $region13
    $region12: #{tpu_custom_call.1} parent=1 // pred_region
      %46 = vsyncadd [#allocation7], 0
      %s47 = sshll.u32 %s2, 4
      %s48 = int_to_ptr.hbm [resolvable:$true] %s47
      %s49 = sshll.u32 [#allocation8], 4
      %s50 = int_to_ptr.vmem [resolvable:$true] %s49
      %55 = dma.hbm_to_vmem [thread:$0]  %s48, 512, %s50, [#allocation7], 128, 128, 8
    $region13: #{tpu_custom_call.1} parent=1 // pred_fallthru
      _
    // Predicated region
    $region14: #{tpu_custom_call.1} parent=1 // pred_check
      _
    $region15: #{tpu_custom_call.1} parent=1 // pred_check_branch
      %57 = sbr.rel (0) target = $region17
    $region16: #{tpu_custom_call.1} parent=1 // pred_region
      _
    $region17: #{tpu_custom_call.1} parent=1 // pred_fallthru
      _
    // Predicated region
    $region18: #{tpu_custom_call.1} parent=1 // pred_check
      _
    $region19: #{tpu_custom_call.1} parent=1 // pred_check_branch
      %59 = sbr.rel (0) target = $region21
    $region20: #{tpu_custom_call.1} parent=1 // pred_region
      %61 = vsyncadd [#allocation10], 0
      %s62 = sshll.u32 %s4, 4
      %s63 = int_to_ptr.hbm [resolvable:$true] %s62
      %s64 = sshll.u32 [#allocation9], 4
      %s65 = int_to_ptr.vmem [resolvable:$true] %s64
      %70 = dma.hbm_to_vmem [thread:$0]  %s63, 512, %s65, [#allocation10], 128, 128, 8
    $region21: #{tpu_custom_call.1} parent=1 // pred_fallthru
      _
    // Predicated region
    $region22: #{tpu_custom_call.1} parent=1 // pred_check
      _
    $region23: #{tpu_custom_call.1} parent=1 // pred_check_branch
      %72 = sbr.rel (0) target = $region25
    $region24: #{tpu_custom_call.1} parent=1 // pred_region
      %74 = vsyncadd [#allocation10], 0
      %s75 = sshll.u32 %s5, 4
      %s76 = int_to_ptr.hbm [resolvable:$true] %s75
      %s77 = sshll.u32 [#allocation11], 4
      %s78 = int_to_ptr.vmem [resolvable:$true] %s77
      %83 = dma.hbm_to_vmem [thread:$0]  %s76, 512, %s78, [#allocation10], 128, 128, 8
    $region25: #{tpu_custom_call.1} parent=1 // pred_fallthru
      _
    // Predicated region
    $region26: #{tpu_custom_call.1} parent=1 // pred_check
      _
    $region27: #{tpu_custom_call.1} parent=1 // pred_check_branch
      %85 = sbr.rel (0) target = $region29
    $region28: #{tpu_custom_call.1} parent=1 // pred_region
      _
    $region29: #{tpu_custom_call.1} parent=1 // pred_fallthru
      _
    // Predicated region
    $region30: #{tpu_custom_call.1} parent=1 // pred_check
      _
    $region31: #{tpu_custom_call.1} parent=1 // pred_check_branch
      %87 = sbr.rel (0) target = $region33
    $region32: #{tpu_custom_call.1} parent=1 // pred_region
      _
    $region33: #{tpu_custom_call.1} parent=1 // pred_fallthru
      _
    // Predicated region
    $region34: #{tpu_custom_call.1} parent=1 // pred_check
      _
    $region35: #{tpu_custom_call.1} parent=1 // pred_check_branch
      %89 = sbr.rel (0) target = $region37
    $region36: #{tpu_custom_call.1} parent=1 // pred_region
      _
    $region37: #{tpu_custom_call.1} parent=1 // pred_fallthru
      _
    // Predicated region
    $region38: #{tpu_custom_call.1} parent=1 // pred_check
      _
    $region39: #{tpu_custom_call.1} parent=1 // pred_check_branch
      %91 = sbr.rel (0) target = $region41
    $region40: #{tpu_custom_call.1} parent=1 // pred_region
      %93 = dma.done [#allocation5], 256
    $region41: #{tpu_custom_call.1} parent=1 // pred_fallthru
      _
    // Predicated region
    $region42: #{tpu_custom_call.1} parent=1 // pred_check
      _
    $region43: #{tpu_custom_call.1} parent=1 // pred_check_branch
      %95 = sbr.rel (0) target = $region45
    $region44: #{tpu_custom_call.1} parent=1 // pred_region
      %97 = dma.done [#allocation7], 128
    $region45: #{tpu_custom_call.1} parent=1 // pred_fallthru
      _
    // Predicated region
    $region46: #{tpu_custom_call.1} parent=1 // pred_check
      _
    $region47: #{tpu_custom_call.1} parent=1 // pred_check_branch
      %99 = sbr.rel (0) target = $region49
    $region48: #{tpu_custom_call.1} parent=1 // pred_region
      %101 = dma.done [#allocation7], 512
    $region49: #{tpu_custom_call.1} parent=1 // pred_fallthru
      _
    // Predicated region
    $region50: #{tpu_custom_call.1} parent=1 // pred_check
      _
    $region51: #{tpu_custom_call.1} parent=1 // pred_check_branch
      %103 = sbr.rel (0) target = $region53
    $region52: #{tpu_custom_call.1} parent=1 // pred_region
      %105 = dma.done [#allocation10], 512
    $region53: #{tpu_custom_call.1} parent=1 // pred_fallthru
      _
    // Predicated region
    $region54: #{tpu_custom_call.1} parent=1 // pred_check
      _
    $region55: #{tpu_custom_call.1} parent=1 // pred_check_branch
      %107 = sbr.rel (0) target = $region57
    $region56: #{tpu_custom_call.1} parent=1 // pred_region
      %109 = dma.done [#allocation10], 512
    $region57: #{tpu_custom_call.1} parent=1 // pred_fallthru
      _
    %v110 = vld [vmem:[#allocation4] sm:$0x3]
    %v111 = vld [vmem:[#allocation4 + $0x2] sm:$0x3]
    %v112 = vld [vmem:[#allocation4 + $0x4] sm:$0x3]
    %v113 = vld [vmem:[#allocation4 + $0x6] sm:$0x3]
    %v114 = vld [vmem:[#allocation4 + $0x8] sm:$0x3]
    %v115 = vld [vmem:[#allocation4 + $0xa] sm:$0x3]
    %v116 = vld [vmem:[#allocation4 + $0xc] sm:$0x3]
    %v117 = vld [vmem:[#allocation4 + $0xe] sm:$0x3]
    %v118 = vld [vmem:[#allocation6] sm:$0xff]
    %v119 = vld [vmem:[%s3] sm:$0x1]
    %v121 = vperm.slane %v119, 0
    %131 = vst [vmem:[#allocation1] ss:$4 sm:$0xff] %v110
    %s132 = scalar_lea.vmem [#allocation1], 1
    %133 = vst [vmem:[%s132] ss:$4 sm:$0xff] %v111
    %s134 = scalar_lea.vmem [#allocation1], 2
    %135 = vst [vmem:[%s134] ss:$4 sm:$0xff] %v112
    %s136 = scalar_lea.vmem [#allocation1], 3
    %137 = vst [vmem:[%s136] ss:$4 sm:$0xff] %v113
    %s138 = scalar_lea.vmem [#allocation1], 32
    %139 = vst [vmem:[%s138] ss:$4 sm:$0xff] %v114
    %s140 = scalar_lea.vmem [#allocation1], 33
    %141 = vst [vmem:[%s140] ss:$4 sm:$0xff] %v115
    %s142 = scalar_lea.vmem [#allocation1], 34
    %143 = vst [vmem:[%s142] ss:$4 sm:$0xff] %v116
    %s144 = scalar_lea.vmem [#allocation1], 35
    %145 = vst [vmem:[%s144] ss:$4 sm:$0xff] %v117
    %v146 = vld.sshfl [vmem:[#allocation1] sm:$0xff pattern:$0x73625140]
    %v147 = vld.sshfl [vmem:[#allocation1 + $0x20] sm:$0xff pattern:$0x73625140]
    %vm148 = vcmask 64512
    %v149 = vsel %vm148, %v146, 0
    %v151 = vsel %vm148, %v147, 0
    %153 = vmatpush.msra.mxu0 0.0
    %154 = vmatpush.msra.mxu0 0.0
    %155 = vmatpush.msra.mxu0 0.0
    %156 = vmatpush.msra.mxu0 0.0
    %157 = vmatpush.msra.mxu0 0.0
    %158 = vmatpush.msra.mxu0 0.0
    %159 = vmatpush.msra.mxu0 0.0
    %160 = vmatpush.msra.mxu0 0.0
    %161 = vmatpush.msra.mxu0 0.0
    %162 = vmatpush.msra.mxu0 0.0
    %163 = vmatpush.msra.mxu0 0.0
    %164 = vmatpush.msra.mxu0 0.0
    %165 = vmatpush.msra.mxu0 0.0
    %166 = vmatpush.msra.mxu0 0.0
    %167 = vmatpush.msra.mxu0 0.0
    %168 = vmatpush.msra.mxu0 %v118
    %169 = vmatmul.f32.gmra.mxu0 %v149
    %v170 = vpop.f32.mrf.mxu0
    %v171 = vadd.f32 %v121, %v170
    %172 = vmatmul.f32.gmra.mxu0 %v151
    %v173 = vpop.f32.mrf.mxu0
    %v174 = vadd.f32 %v121, %v173
    %175 = vdwg.mxu0
    %v176 = vld [vmem:[#allocation8] sm:$0xff]
    %v177 = vld [vmem:[#allocation8 + $0x8] sm:$0xff]
    %v178 = vld [vmem:[#allocation8 + $0x10] sm:$0xff]
    %v179 = vld [vmem:[#allocation8 + $0x18] sm:$0xff]
    %vm180 = vcmask 261120
    %v182 = vsel %vm180, 0.0, 0
    %184 = vmatpush.msra.mxu0 0.0
    %185 = vmatpush.msra.mxu0 0.0
    %186 = vmatpush.msra.mxu0 0.0
    %187 = vmatpush.msra.mxu0 0.0
    %188 = vmatpush.msra.mxu0 0.0
    %189 = vmatpush.msra.mxu0 0.0
    %190 = vmatpush.msra.mxu0 0.0
    %191 = vmatpush.msra.mxu0 0.0
    %192 = vmatpush.msra.mxu0 0.0
    %193 = vmatpush.msra.mxu0 0.0
    %194 = vmatpush.msra.mxu0 0.0
    %195 = vmatpush.msra.mxu0 0.0
    %196 = vmatpush.msra.mxu0 %v179
    %197 = vmatpush.msra.mxu0 %v178
    %198 = vmatpush.msra.mxu0 %v177
    %199 = vmatpush.msra.mxu0 %v176
    %200 = vmatmul.f32.gmra.mxu0 %v182
    %v201 = vpop.f32.mrf.mxu0
    %v202 = vadd.f32 0.0, %v201
    %203 = vdwg.mxu0
    %v204 = vadd.f32 %v171, %v202
    %v205 = vxor.u32 %v204, 2147483648
    %v206 = vmul.f32 %v205, 1.442695
    %v207 = vpow.pop %v206
    %v208 = vadd.f32 %v207, 1.0
    %v209 = vrcp.pop %v208
    %v210 = vmul.f32 %v208, %v209
    %v211 = vsub.f32 1.0, %v210
    %v212 = vmul.f32 %v209, %v211
    %v213 = vadd.f32 %v209, %v212
    %vm214 = vweird.f32 %v208
    %vm215 = vweird.f32 %v209
    %vm216 = vmor %vm214, %vm215
    %v217 = vsel %vm216, %v209, %v213
    %v218 = vand.u32 2147483647, %v208
    %vm219 = vcmp.eq.f32.partialorder %v218, 8.507059e+37
    %v220 = vand.u32 %v208, 2147483648
    %v221 = vor.u32 1.1754944e-38, %v220
    %v222 = vsel %vm219, %v221, %v217
    %v223 = vmul.f32 1.0, %v222
    %v224 = vtanh.pop %v204
    %v225 = vmul.f32 %v223, 0.0
    %227 = vrot.lane.b32.xlu0 %v224, 64
    %v228 = vpop.permute.xlu0 %227
    %v230 = vmul.f32 %v223, %v228
    %232 = vrot.lane.b32.xlu0 %v230, 32
    %v233 = vpop.permute.xlu0 %232
    %v235 = vadd.f32 %v225, %v233
    %v236 = vtanh.pop %v235
    %238 = vrot.lane.b32.xlu0 %v236, 64
    %v239 = vpop.permute.xlu0 %238
    %v241 = vmul.f32 %v223, %v239
    %243 = vrot.lane.b32.xlu0 %v241, 32
    %v244 = vpop.permute.xlu0 %243
    %vm246 = vcmask 254976
    %247 = vst.msk [vmem:[#allocation2] sm:$0x3] %vm246, %v244
    %v248 = vsel %vm180, %v244, 0
    %250 = vmatpush.msra.mxu0 0.0
    %251 = vmatpush.msra.mxu0 0.0
    %252 = vmatpush.msra.mxu0 0.0
    %253 = vmatpush.msra.mxu0 0.0
    %254 = vmatpush.msra.mxu0 0.0
    %255 = vmatpush.msra.mxu0 0.0
    %256 = vmatpush.msra.mxu0 0.0
    %257 = vmatpush.msra.mxu0 0.0
    %258 = vmatpush.msra.mxu0 0.0
    %259 = vmatpush.msra.mxu0 0.0
    %260 = vmatpush.msra.mxu0 0.0
    %261 = vmatpush.msra.mxu0 0.0
    %262 = vmatpush.msra.mxu0 %v179
    %263 = vmatpush.msra.mxu0 %v178
    %264 = vmatpush.msra.mxu0 %v177
    %265 = vmatpush.msra.mxu0 %v176
    %266 = vmatmul.f32.gmra.mxu0 %v248
    %v267 = vpop.f32.mrf.mxu0
    %v268 = vadd.f32 0.0, %v267
    %269 = vdwg.mxu0
    %v271 = vrot.slane %v268, 6
    %v273 = vadd.f32 %v171, %v271
    %v274 = vxor.u32 %v273, 2147483648
    %v275 = vmul.f32 %v274, 1.442695
    %v276 = vpow.pop %v275
    %v277 = vadd.f32 %v276, 1.0
    %v278 = vrcp.pop %v277
    %v279 = vmul.f32 %v277, %v278
    %v280 = vsub.f32 1.0, %v279
    %v281 = vmul.f32 %v278, %v280
    %v282 = vadd.f32 %v278, %v281
    %vm283 = vweird.f32 %v277
    %vm284 = vweird.f32 %v278
    %vm285 = vmor %vm283, %vm284
    %v286 = vsel %vm285, %v278, %v282
    %v287 = vand.u32 2147483647, %v277
    %vm288 = vcmp.eq.f32.partialorder %v287, 8.507059e+37
    %v289 = vand.u32 %v277, 2147483648
    %v290 = vor.u32 1.1754944e-38, %v289
    %v291 = vsel %vm288, %v290, %v286
    %v292 = vmul.f32 1.0, %v291
    %v293 = vtanh.pop %v273
    %v295 = vrot.slane %v235, 6
    %v297 = vmul.f32 %v292, %v295
    %299 = vrot.lane.b32.xlu0 %v293, 64
    %v300 = vpop.permute.xlu0 %299
    %v302 = vmul.f32 %v292, %v300
    %304 = vrot.lane.b32.xlu0 %v302, 32
    %v305 = vpop.permute.xlu0 %304
    %v307 = vadd.f32 %v297, %v305
    %v308 = vtanh.pop %v307
    %310 = vrot.lane.b32.xlu0 %v308, 64
    %v311 = vpop.permute.xlu0 %310
    %v313 = vmul.f32 %v292, %v311
    %315 = vrot.lane.b32.xlu0 %v313, 32
    %v316 = vpop.permute.xlu0 %315
    %s318 = scalar_lea.vmem [#allocation2], 2
    %vm319 = vcmask 257026
    %320 = vst.msk [vmem:[%s318 - $0x2] sm:$0xc] %vm319, %v316
    %v321 = vrot.slane %v313, 2
    %322 = vrot.lane.b32.xlu0 %v321, 32
    %v323 = vpop.permute.xlu0 %322
    %v324 = vsel %vm180, %v323, 0
    %326 = vmatpush.msra.mxu0 0.0
    %327 = vmatpush.msra.mxu0 0.0
    %328 = vmatpush.msra.mxu0 0.0
    %329 = vmatpush.msra.mxu0 0.0
    %330 = vmatpush.msra.mxu0 0.0
    %331 = vmatpush.msra.mxu0 0.0
    %332 = vmatpush.msra.mxu0 0.0
    %333 = vmatpush.msra.mxu0 0.0
    %334 = vmatpush.msra.mxu0 0.0
    %335 = vmatpush.msra.mxu0 0.0
    %336 = vmatpush.msra.mxu0 0.0
    %337 = vmatpush.msra.mxu0 0.0
    %338 = vmatpush.msra.mxu0 %v179
    %339 = vmatpush.msra.mxu0 %v178
    %340 = vmatpush.msra.mxu0 %v177
    %341 = vmatpush.msra.mxu0 %v176
    %342 = vmatmul.f32.gmra.mxu0 %v324
    %v343 = vpop.f32.mrf.mxu0
    %v344 = vadd.f32 0.0, %v343
    %345 = vdwg.mxu0
    %v347 = vrot.slane %v344, 4
    %v349 = vadd.f32 %v171, %v347
    %v350 = vxor.u32 %v349, 2147483648
    %v351 = vmul.f32 %v350, 1.442695
    %v352 = vpow.pop %v351
    %v353 = vadd.f32 %v352, 1.0
    %v354 = vrcp.pop %v353
    %v355 = vmul.f32 %v353, %v354
    %v356 = vsub.f32 1.0, %v355
    %v357 = vmul.f32 %v354, %v356
    %v358 = vadd.f32 %v354, %v357
    %vm359 = vweird.f32 %v353
    %vm360 = vweird.f32 %v354
    %vm361 = vmor %vm359, %vm360
    %v362 = vsel %vm361, %v354, %v358
    %v363 = vand.u32 2147483647, %v353
    %vm364 = vcmp.eq.f32.partialorder %v363, 8.507059e+37
    %v365 = vand.u32 %v353, 2147483648
    %v366 = vor.u32 1.1754944e-38, %v365
    %v367 = vsel %vm364, %v366, %v362
    %v368 = vmul.f32 1.0, %v367
    %v369 = vtanh.pop %v349
    %v371 = vrot.slane %v307, 6
    %v373 = vmul.f32 %v368, %v371
    %375 = vrot.lane.b32.xlu0 %v369, 64
    %v376 = vpop.permute.xlu0 %375
    %v378 = vmul.f32 %v368, %v376
    %380 = vrot.lane.b32.xlu0 %v378, 32
    %v381 = vpop.permute.xlu0 %380
    %v383 = vadd.f32 %v373, %v381
    %v384 = vtanh.pop %v383
    %386 = vrot.lane.b32.xlu0 %v384, 64
    %v387 = vpop.permute.xlu0 %386
    %v389 = vmul.f32 %v368, %v387
    %391 = vrot.lane.b32.xlu0 %v389, 32
    %v392 = vpop.permute.xlu0 %391
    %s394 = scalar_lea.vmem [#allocation2], 4
    %vm395 = vcmask 259076
    %396 = vst.msk [vmem:[%s394 - $0x4] sm:$0x30] %vm395, %v392
    %v397 = vrot.slane %v389, 4
    %398 = vrot.lane.b32.xlu0 %v397, 32
    %v399 = vpop.permute.xlu0 %398
    %v400 = vsel %vm180, %v399, 0
    %402 = vmatpush.msra.mxu0 0.0
    %403 = vmatpush.msra.mxu0 0.0
    %404 = vmatpush.msra.mxu0 0.0
    %405 = vmatpush.msra.mxu0 0.0
    %406 = vmatpush.msra.mxu0 0.0
    %407 = vmatpush.msra.mxu0 0.0
    %408 = vmatpush.msra.mxu0 0.0
    %409 = vmatpush.msra.mxu0 0.0
    %410 = vmatpush.msra.mxu0 0.0
    %411 = vmatpush.msra.mxu0 0.0
    %412 = vmatpush.msra.mxu0 0.0
    %413 = vmatpush.msra.mxu0 0.0
    %414 = vmatpush.msra.mxu0 %v179
    %415 = vmatpush.msra.mxu0 %v178
    %416 = vmatpush.msra.mxu0 %v177
    %417 = vmatpush.msra.mxu0 %v176
    %418 = vmatmul.f32.gmra.mxu0 %v400
    %v419 = vpop.f32.mrf.mxu0
    %v420 = vadd.f32 0.0, %v419
    %421 = vdwg.mxu0
    %v423 = vrot.slane %v420, 2
    %v425 = vadd.f32 %v171, %v423
    %v426 = vxor.u32 %v425, 2147483648
    %v427 = vmul.f32 %v426, 1.442695
    %v428 = vpow.pop %v427
    %v429 = vadd.f32 %v428, 1.0
    %v430 = vrcp.pop %v429
    %v431 = vmul.f32 %v429, %v430
    %v432 = vsub.f32 1.0, %v431
    %v433 = vmul.f32 %v430, %v432
    %v434 = vadd.f32 %v430, %v433
    %vm435 = vweird.f32 %v429
    %vm436 = vweird.f32 %v430
    %vm437 = vmor %vm435, %vm436
    %v438 = vsel %vm437, %v430, %v434
    %v439 = vand.u32 2147483647, %v429
    %vm440 = vcmp.eq.f32.partialorder %v439, 8.507059e+37
    %v441 = vand.u32 %v429, 2147483648
    %v442 = vor.u32 1.1754944e-38, %v441
    %v443 = vsel %vm440, %v442, %v438
    %v444 = vmul.f32 1.0, %v443
    %v445 = vtanh.pop %v425
    %v447 = vrot.slane %v383, 6
    %v449 = vmul.f32 %v444, %v447
    %451 = vrot.lane.b32.xlu0 %v445, 64
    %v452 = vpop.permute.xlu0 %451
    %v454 = vmul.f32 %v444, %v452
    %456 = vrot.lane.b32.xlu0 %v454, 32
    %v457 = vpop.permute.xlu0 %456
    %v459 = vadd.f32 %v449, %v457
    %v460 = vtanh.pop %v459
    %462 = vrot.lane.b32.xlu0 %v460, 64
    %v463 = vpop.permute.xlu0 %462
    %v465 = vmul.f32 %v444, %v463
    %467 = vrot.lane.b32.xlu0 %v465, 32
    %v468 = vpop.permute.xlu0 %467
    %s470 = scalar_lea.vmem [#allocation2], 6
    %vm471 = vcmask 261126
    %472 = vst.msk [vmem:[%s470 - $0x6] sm:$0xc0] %vm471, %v468
    %v473 = vrot.slane %v465, 6
    %474 = vrot.lane.b32.xlu0 %v473, 32
    %v475 = vpop.permute.xlu0 %474
    %v476 = vsel %vm180, %v475, 0
    %478 = vmatpush.msra.mxu0 0.0
    %479 = vmatpush.msra.mxu0 0.0
    %480 = vmatpush.msra.mxu0 0.0
    %481 = vmatpush.msra.mxu0 0.0
    %482 = vmatpush.msra.mxu0 0.0
    %483 = vmatpush.msra.mxu0 0.0
    %484 = vmatpush.msra.mxu0 0.0
    %485 = vmatpush.msra.mxu0 0.0
    %486 = vmatpush.msra.mxu0 0.0
    %487 = vmatpush.msra.mxu0 0.0
    %488 = vmatpush.msra.mxu0 0.0
    %489 = vmatpush.msra.mxu0 0.0
    %490 = vmatpush.msra.mxu0 %v179
    %491 = vmatpush.msra.mxu0 %v178
    %492 = vmatpush.msra.mxu0 %v177
    %493 = vmatpush.msra.mxu0 %v176
    %494 = vmatmul.f32.gmra.mxu0 %v476
    %v495 = vpop.f32.mrf.mxu0
    %v496 = vadd.f32 0.0, %v495
    %497 = vdwg.mxu0
    %v498 = vadd.f32 %v174, %v496
    %v499 = vxor.u32 %v498, 2147483648
    %v500 = vmul.f32 %v499, 1.442695
    %v501 = vpow.pop %v500
    %v502 = vadd.f32 %v501, 1.0
    %v503 = vrcp.pop %v502
    %v504 = vmul.f32 %v502, %v503
    %v505 = vsub.f32 1.0, %v504
    %v506 = vmul.f32 %v503, %v505
    %v507 = vadd.f32 %v503, %v506
    %vm508 = vweird.f32 %v502
    %vm509 = vweird.f32 %v503
    %vm510 = vmor %vm508, %vm509
    %v511 = vsel %vm510, %v503, %v507
    %v512 = vand.u32 2147483647, %v502
    %vm513 = vcmp.eq.f32.partialorder %v512, 8.507059e+37
    %v514 = vand.u32 %v502, 2147483648
    %v515 = vor.u32 1.1754944e-38, %v514
    %v516 = vsel %vm513, %v515, %v511
    %v517 = vmul.f32 1.0, %v516
    %v518 = vtanh.pop %v498
    %v520 = vrot.slane %v459, 6
    %v522 = vmul.f32 %v517, %v520
    %524 = vrot.lane.b32.xlu0 %v518, 64
    %v525 = vpop.permute.xlu0 %524
    %v527 = vmul.f32 %v517, %v525
    %529 = vrot.lane.b32.xlu0 %v527, 32
    %v530 = vpop.permute.xlu0 %529
    %v532 = vadd.f32 %v522, %v530
    %v533 = vtanh.pop %v532
    %535 = vrot.lane.b32.xlu0 %v533, 64
    %v536 = vpop.permute.xlu0 %535
    %v538 = vmul.f32 %v517, %v536
    %540 = vrot.lane.b32.xlu0 %v538, 32
    %v541 = vpop.permute.xlu0 %540
    %s543 = scalar_lea.vmem [#allocation2], 8
    %544 = vst.msk [vmem:[%s543] sm:$0x3] %vm246, %v541
    %v545 = vsel %vm180, %v541, 0
    %547 = vmatpush.msra.mxu0 0.0
    %548 = vmatpush.msra.mxu0 0.0
    %549 = vmatpush.msra.mxu0 0.0
    %550 = vmatpush.msra.mxu0 0.0
    %551 = vmatpush.msra.mxu0 0.0
    %552 = vmatpush.msra.mxu0 0.0
    %553 = vmatpush.msra.mxu0 0.0
    %554 = vmatpush.msra.mxu0 0.0
    %555 = vmatpush.msra.mxu0 0.0
    %556 = vmatpush.msra.mxu0 0.0
    %557 = vmatpush.msra.mxu0 0.0
    %558 = vmatpush.msra.mxu0 0.0
    %559 = vmatpush.msra.mxu0 %v179
    %560 = vmatpush.msra.mxu0 %v178
    %561 = vmatpush.msra.mxu0 %v177
    %562 = vmatpush.msra.mxu0 %v176
    %563 = vmatmul.f32.gmra.mxu0 %v545
    %v564 = vpop.f32.mrf.mxu0
    %v565 = vadd.f32 0.0, %v564
    %566 = vdwg.mxu0
    %v568 = vrot.slane %v565, 6
    %v570 = vadd.f32 %v174, %v568
    %v571 = vxor.u32 %v570, 2147483648
    %v572 = vmul.f32 %v571, 1.442695
    %v573 = vpow.pop %v572
    %v574 = vadd.f32 %v573, 1.0
    %v575 = vrcp.pop %v574
    %v576 = vmul.f32 %v574, %v575
    %v577 = vsub.f32 1.0, %v576
    %v578 = vmul.f32 %v575, %v577
    %v579 = vadd.f32 %v575, %v578
    %vm580 = vweird.f32 %v574
    %vm581 = vweird.f32 %v575
    %vm582 = vmor %vm580, %vm581
    %v583 = vsel %vm582, %v575, %v579
    %v584 = vand.u32 2147483647, %v574
    %vm585 = vcmp.eq.f32.partialorder %v584, 8.507059e+37
    %v586 = vand.u32 %v574, 2147483648
    %v587 = vor.u32 1.1754944e-38, %v586
    %v588 = vsel %vm585, %v587, %v583
    %v589 = vmul.f32 1.0, %v588
    %v590 = vtanh.pop %v570
    %v592 = vrot.slane %v532, 6
    %v594 = vmul.f32 %v589, %v592
    %596 = vrot.lane.b32.xlu0 %v590, 64
    %v597 = vpop.permute.xlu0 %596
    %v599 = vmul.f32 %v589, %v597
    %601 = vrot.lane.b32.xlu0 %v599, 32
    %v602 = vpop.permute.xlu0 %601
    %v604 = vadd.f32 %v594, %v602
    %v605 = vtanh.pop %v604
    %607 = vrot.lane.b32.xlu0 %v605, 64
    %v608 = vpop.permute.xlu0 %607
    %v610 = vmul.f32 %v589, %v608
    %612 = vrot.lane.b32.xlu0 %v610, 32
    %v613 = vpop.permute.xlu0 %612
    %s615 = scalar_lea.vmem [#allocation2], 10
    %616 = vst.msk [vmem:[%s615 - $0x2] sm:$0xc] %vm319, %v613
    %v617 = vrot.slane %v610, 2
    %618 = vrot.lane.b32.xlu0 %v617, 32
    %v619 = vpop.permute.xlu0 %618
    %v620 = vsel %vm180, %v619, 0
    %622 = vmatpush.msra.mxu0 0.0
    %623 = vmatpush.msra.mxu0 0.0
    %624 = vmatpush.msra.mxu0 0.0
    %625 = vmatpush.msra.mxu0 0.0
    %626 = vmatpush.msra.mxu0 0.0
    %627 = vmatpush.msra.mxu0 0.0
    %628 = vmatpush.msra.mxu0 0.0
    %629 = vmatpush.msra.mxu0 0.0
    %630 = vmatpush.msra.mxu0 0.0
    %631 = vmatpush.msra.mxu0 0.0
    %632 = vmatpush.msra.mxu0 0.0
    %633 = vmatpush.msra.mxu0 0.0
    %634 = vmatpush.msra.mxu0 %v179
    %635 = vmatpush.msra.mxu0 %v178
    %636 = vmatpush.msra.mxu0 %v177
    %637 = vmatpush.msra.mxu0 %v176
    %638 = vmatmul.f32.gmra.mxu0 %v620
    %v639 = vpop.f32.mrf.mxu0
    %v640 = vadd.f32 0.0, %v639
    %641 = vdwg.mxu0
    %v643 = vrot.slane %v640, 4
    %v645 = vadd.f32 %v174, %v643
    %v646 = vxor.u32 %v645, 2147483648
    %v647 = vmul.f32 %v646, 1.442695
    %v648 = vpow.pop %v647
    %v649 = vadd.f32 %v648, 1.0
    %v650 = vrcp.pop %v649
    %v651 = vmul.f32 %v649, %v650
    %v652 = vsub.f32 1.0, %v651
    %v653 = vmul.f32 %v650, %v652
    %v654 = vadd.f32 %v650, %v653
    %vm655 = vweird.f32 %v649
    %vm656 = vweird.f32 %v650
    %vm657 = vmor %vm655, %vm656
    %v658 = vsel %vm657, %v650, %v654
    %v659 = vand.u32 2147483647, %v649
    %vm660 = vcmp.eq.f32.partialorder %v659, 8.507059e+37
    %v661 = vand.u32 %v649, 2147483648
    %v662 = vor.u32 1.1754944e-38, %v661
    %v663 = vsel %vm660, %v662, %v658
    %v664 = vmul.f32 1.0, %v663
    %v665 = vtanh.pop %v645
    %v667 = vrot.slane %v604, 6
    %v669 = vmul.f32 %v664, %v667
    %671 = vrot.lane.b32.xlu0 %v665, 64
    %v672 = vpop.permute.xlu0 %671
    %v674 = vmul.f32 %v664, %v672
    %676 = vrot.lane.b32.xlu0 %v674, 32
    %v677 = vpop.permute.xlu0 %676
    %v679 = vadd.f32 %v669, %v677
    %v680 = vtanh.pop %v679
    %682 = vrot.lane.b32.xlu0 %v680, 64
    %v683 = vpop.permute.xlu0 %682
    %v685 = vmul.f32 %v664, %v683
    %687 = vrot.lane.b32.xlu0 %v685, 32
    %v688 = vpop.permute.xlu0 %687
    %s690 = scalar_lea.vmem [#allocation2], 12
    %691 = vst.msk [vmem:[%s690 - $0x4] sm:$0x30] %vm395, %v688
    %v692 = vrot.slane %v685, 4
    %693 = vrot.lane.b32.xlu0 %v692, 32
    %v694 = vpop.permute.xlu0 %693
    %v695 = vsel %vm180, %v694, 0
    %697 = vmatpush.msra.mxu0 0.0
    %698 = vmatpush.msra.mxu0 0.0
    %699 = vmatpush.msra.mxu0 0.0
    %700 = vmatpush.msra.mxu0 0.0
    %701 = vmatpush.msra.mxu0 0.0
    %702 = vmatpush.msra.mxu0 0.0
    %703 = vmatpush.msra.mxu0 0.0
    %704 = vmatpush.msra.mxu0 0.0
    %705 = vmatpush.msra.mxu0 0.0
    %706 = vmatpush.msra.mxu0 0.0
    %707 = vmatpush.msra.mxu0 0.0
    %708 = vmatpush.msra.mxu0 0.0
    %709 = vmatpush.msra.mxu0 %v179
    %710 = vmatpush.msra.mxu0 %v178
    %711 = vmatpush.msra.mxu0 %v177
    %712 = vmatpush.msra.mxu0 %v176
    %713 = vmatmul.f32.gmra.mxu0 %v695
    %v714 = vpop.f32.mrf.mxu0
    %v715 = vadd.f32 0.0, %v714
    %716 = vdwg.mxu0
    %v718 = vrot.slane %v715, 2
    %v720 = vadd.f32 %v174, %v718
    %v721 = vxor.u32 %v720, 2147483648
    %v722 = vmul.f32 %v721, 1.442695
    %v723 = vpow.pop %v722
    %v724 = vadd.f32 %v723, 1.0
    %v725 = vrcp.pop %v724
    %v726 = vmul.f32 %v724, %v725
    %v727 = vsub.f32 1.0, %v726
    %v728 = vmul.f32 %v725, %v727
    %v729 = vadd.f32 %v725, %v728
    %vm730 = vweird.f32 %v724
    %vm731 = vweird.f32 %v725
    %vm732 = vmor %vm730, %vm731
    %v733 = vsel %vm732, %v725, %v729
    %v734 = vand.u32 2147483647, %v724
    %vm735 = vcmp.eq.f32.partialorder %v734, 8.507059e+37
    %v736 = vand.u32 %v724, 2147483648
    %v737 = vor.u32 1.1754944e-38, %v736
    %v738 = vsel %vm735, %v737, %v733
    %v739 = vmul.f32 1.0, %v738
    %v740 = vtanh.pop %v720
    %v742 = vrot.slane %v679, 6
    %v744 = vmul.f32 %v739, %v742
    %746 = vrot.lane.b32.xlu0 %v740, 64
    %v747 = vpop.permute.xlu0 %746
    %v749 = vmul.f32 %v739, %v747
    %751 = vrot.lane.b32.xlu0 %v749, 32
    %v752 = vpop.permute.xlu0 %751
    %v754 = vadd.f32 %v744, %v752
    %v755 = vtanh.pop %v754
    %757 = vrot.lane.b32.xlu0 %v755, 64
    %v758 = vpop.permute.xlu0 %757
    %v760 = vmul.f32 %v739, %v758
    %762 = vrot.lane.b32.xlu0 %v760, 32
    %v763 = vpop.permute.xlu0 %762
    %s765 = scalar_lea.vmem [#allocation2], 14
    %766 = vst.msk [vmem:[%s765 - $0x6] sm:$0xc0] %vm471, %v763
    %v767 = vld [vmem:[#allocation2] sm:$0x3]
    %v768 = vld [vmem:[#allocation2 + $0x2] sm:$0x3]
    %v769 = vld [vmem:[#allocation2 + $0x4] sm:$0x3]
    %v770 = vld [vmem:[#allocation2 + $0x6] sm:$0x3]
    %v771 = vld [vmem:[#allocation2 + $0x8] sm:$0x3]
    %v772 = vld [vmem:[#allocation2 + $0xa] sm:$0x3]
    %v773 = vld [vmem:[#allocation2 + $0xc] sm:$0x3]
    %v774 = vld [vmem:[#allocation2 + $0xe] sm:$0x3]
    %v775 = vld [vmem:[#allocation9] sm:$0xff]
    %v776 = vld [vmem:[#allocation9 + $0x8] sm:$0xff]
    %v777 = vld [vmem:[#allocation9 + $0x10] sm:$0xff]
    %v778 = vld [vmem:[#allocation9 + $0x18] sm:$0xff]
    %v779 = vld [vmem:[%s6] sm:$0x1]
    %v781 = vperm.slane %v779, 0
    %791 = vst [vmem:[#allocation1] ss:$4 sm:$0xff] %v767
    %s792 = scalar_lea.vmem [#allocation1], 1
    %793 = vst [vmem:[%s792] ss:$4 sm:$0xff] %v768
    %s794 = scalar_lea.vmem [#allocation1], 2
    %795 = vst [vmem:[%s794] ss:$4 sm:$0xff] %v769
    %s796 = scalar_lea.vmem [#allocation1], 3
    %797 = vst [vmem:[%s796] ss:$4 sm:$0xff] %v770
    %s798 = scalar_lea.vmem [#allocation1], 32
    %799 = vst [vmem:[%s798] ss:$4 sm:$0xff] %v771
    %s800 = scalar_lea.vmem [#allocation1], 33
    %801 = vst [vmem:[%s800] ss:$4 sm:$0xff] %v772
    %s802 = scalar_lea.vmem [#allocation1], 34
    %803 = vst [vmem:[%s802] ss:$4 sm:$0xff] %v773
    %s804 = scalar_lea.vmem [#allocation1], 35
    %805 = vst [vmem:[%s804] ss:$4 sm:$0xff] %v774
    %v806 = vld.sshfl [vmem:[#allocation1] sm:$0xff pattern:$0x73625140]
    %v807 = vld.sshfl [vmem:[#allocation1 + $0x20] sm:$0xff pattern:$0x73625140]
    %v808 = vsel %vm180, %v806, 0
    %v810 = vsel %vm180, %v807, 0
    %812 = vmatpush.msra.mxu0 0.0
    %813 = vmatpush.msra.mxu0 0.0
    %814 = vmatpush.msra.mxu0 0.0
    %815 = vmatpush.msra.mxu0 0.0
    %816 = vmatpush.msra.mxu0 0.0
    %817 = vmatpush.msra.mxu0 0.0
    %818 = vmatpush.msra.mxu0 0.0
    %819 = vmatpush.msra.mxu0 0.0
    %820 = vmatpush.msra.mxu0 0.0
    %821 = vmatpush.msra.mxu0 0.0
    %822 = vmatpush.msra.mxu0 0.0
    %823 = vmatpush.msra.mxu0 0.0
    %824 = vmatpush.msra.mxu0 %v778
    %825 = vmatpush.msra.mxu0 %v777
    %826 = vmatpush.msra.mxu0 %v776
    %827 = vmatpush.msra.mxu0 %v775
    %828 = vmatmul.f32.gmra.mxu0 %v808
    %v829 = vpop.f32.mrf.mxu0
    %v830 = vadd.f32 %v781, %v829
    %831 = vmatmul.f32.gmra.mxu0 %v810
    %v832 = vpop.f32.mrf.mxu0
    %v833 = vadd.f32 %v781, %v832
    %834 = vdwg.mxu0
    %v835 = vld [vmem:[#allocation11] sm:$0xff]
    %v836 = vld [vmem:[#allocation11 + $0x8] sm:$0xff]
    %v837 = vld [vmem:[#allocation11 + $0x10] sm:$0xff]
    %v838 = vld [vmem:[#allocation11 + $0x18] sm:$0xff]
    %839 = vmatpush.msra.mxu0 0.0
    %840 = vmatpush.msra.mxu0 0.0
    %841 = vmatpush.msra.mxu0 0.0
    %842 = vmatpush.msra.mxu0 0.0
    %843 = vmatpush.msra.mxu0 0.0
    %844 = vmatpush.msra.mxu0 0.0
    %845 = vmatpush.msra.mxu0 0.0
    %846 = vmatpush.msra.mxu0 0.0
    %847 = vmatpush.msra.mxu0 0.0
    %848 = vmatpush.msra.mxu0 0.0
    %849 = vmatpush.msra.mxu0 0.0
    %850 = vmatpush.msra.mxu0 0.0
    %851 = vmatpush.msra.mxu0 %v838
    %852 = vmatpush.msra.mxu0 %v837
    %853 = vmatpush.msra.mxu0 %v836
    %854 = vmatpush.msra.mxu0 %v835
    %855 = vmatmul.f32.gmra.mxu0 %v182
    %v856 = vpop.f32.mrf.mxu0
    %v857 = vadd.f32 0.0, %v856
    %858 = vdwg.mxu0
    %v859 = vadd.f32 %v830, %v857
    %v860 = vxor.u32 %v859, 2147483648
    %v861 = vmul.f32 %v860, 1.442695
    %v862 = vpow.pop %v861
    %v863 = vadd.f32 %v862, 1.0
    %v864 = vrcp.pop %v863
    %v865 = vmul.f32 %v863, %v864
    %v866 = vsub.f32 1.0, %v865
    %v867 = vmul.f32 %v864, %v866
    %v868 = vadd.f32 %v864, %v867
    %vm869 = vweird.f32 %v863
    %vm870 = vweird.f32 %v864
    %vm871 = vmor %vm869, %vm870
    %v872 = vsel %vm871, %v864, %v868
    %v873 = vand.u32 2147483647, %v863
    %vm874 = vcmp.eq.f32.partialorder %v873, 8.507059e+37
    %v875 = vand.u32 %v863, 2147483648
    %v876 = vor.u32 1.1754944e-38, %v875
    %v877 = vsel %vm874, %v876, %v872
    %v878 = vmul.f32 1.0, %v877
    %v879 = vtanh.pop %v859
    %v880 = vmul.f32 %v878, 0.0
    %882 = vrot.lane.b32.xlu0 %v879, 64
    %v883 = vpop.permute.xlu0 %882
    %v885 = vmul.f32 %v878, %v883
    %887 = vrot.lane.b32.xlu0 %v885, 32
    %v888 = vpop.permute.xlu0 %887
    %v890 = vadd.f32 %v880, %v888
    %v891 = vtanh.pop %v890
    %893 = vrot.lane.b32.xlu0 %v891, 64
    %v894 = vpop.permute.xlu0 %893
    %v896 = vmul.f32 %v878, %v894
    %898 = vrot.lane.b32.xlu0 %v896, 32
    %v899 = vpop.permute.xlu0 %898
    %v900 = vsel %vm180, %v899, 0
    %902 = vmatpush.msra.mxu0 0.0
    %903 = vmatpush.msra.mxu0 0.0
    %904 = vmatpush.msra.mxu0 0.0
    %905 = vmatpush.msra.mxu0 0.0
    %906 = vmatpush.msra.mxu0 0.0
    %907 = vmatpush.msra.mxu0 0.0
    %908 = vmatpush.msra.mxu0 0.0
    %909 = vmatpush.msra.mxu0 0.0
    %910 = vmatpush.msra.mxu0 0.0
    %911 = vmatpush.msra.mxu0 0.0
    %912 = vmatpush.msra.mxu0 0.0
    %913 = vmatpush.msra.mxu0 0.0
    %914 = vmatpush.msra.mxu0 %v838
    %915 = vmatpush.msra.mxu0 %v837
    %916 = vmatpush.msra.mxu0 %v836
    %917 = vmatpush.msra.mxu0 %v835
    %918 = vmatmul.f32.gmra.mxu0 %v900
    %v919 = vpop.f32.mrf.mxu0
    %v920 = vadd.f32 0.0, %v919
    %921 = vdwg.mxu0
    %v923 = vrot.slane %v920, 6
    %v925 = vadd.f32 %v830, %v923
    %v926 = vxor.u32 %v925, 2147483648
    %v927 = vmul.f32 %v926, 1.442695
    %v928 = vpow.pop %v927
    %v929 = vadd.f32 %v928, 1.0
    %v930 = vrcp.pop %v929
    %v931 = vmul.f32 %v929, %v930
    %v932 = vsub.f32 1.0, %v931
    %v933 = vmul.f32 %v930, %v932
    %v934 = vadd.f32 %v930, %v933
    %vm935 = vweird.f32 %v929
    %vm936 = vweird.f32 %v930
    %vm937 = vmor %vm935, %vm936
    %v938 = vsel %vm937, %v930, %v934
    %v939 = vand.u32 2147483647, %v929
    %vm940 = vcmp.eq.f32.partialorder %v939, 8.507059e+37
    %v941 = vand.u32 %v929, 2147483648
    %v942 = vor.u32 1.1754944e-38, %v941
    %v943 = vsel %vm940, %v942, %v938
    %v944 = vmul.f32 1.0, %v943
    %v945 = vtanh.pop %v925
    %v947 = vrot.slane %v890, 6
    %v949 = vmul.f32 %v944, %v947
    %951 = vrot.lane.b32.xlu0 %v945, 64
    %v952 = vpop.permute.xlu0 %951
    %v954 = vmul.f32 %v944, %v952
    %956 = vrot.lane.b32.xlu0 %v954, 32
    %v957 = vpop.permute.xlu0 %956
    %v959 = vadd.f32 %v949, %v957
    %v960 = vtanh.pop %v959
    %962 = vrot.lane.b32.xlu0 %v960, 64
    %v963 = vpop.permute.xlu0 %962
    %v965 = vmul.f32 %v944, %v963
    %v967 = vrot.slane %v965, 2
    %968 = vrot.lane.b32.xlu0 %v967, 32
    %v969 = vpop.permute.xlu0 %968
    %v970 = vsel %vm180, %v969, 0
    %972 = vmatpush.msra.mxu0 0.0
    %973 = vmatpush.msra.mxu0 0.0
    %974 = vmatpush.msra.mxu0 0.0
    %975 = vmatpush.msra.mxu0 0.0
    %976 = vmatpush.msra.mxu0 0.0
    %977 = vmatpush.msra.mxu0 0.0
    %978 = vmatpush.msra.mxu0 0.0
    %979 = vmatpush.msra.mxu0 0.0
    %980 = vmatpush.msra.mxu0 0.0
    %981 = vmatpush.msra.mxu0 0.0
    %982 = vmatpush.msra.mxu0 0.0
    %983 = vmatpush.msra.mxu0 0.0
    %984 = vmatpush.msra.mxu0 %v838
    %985 = vmatpush.msra.mxu0 %v837
    %986 = vmatpush.msra.mxu0 %v836
    %987 = vmatpush.msra.mxu0 %v835
    %988 = vmatmul.f32.gmra.mxu0 %v970
    %v989 = vpop.f32.mrf.mxu0
    %v990 = vadd.f32 0.0, %v989
    %991 = vdwg.mxu0
    %v993 = vrot.slane %v990, 4
    %v995 = vadd.f32 %v830, %v993
    %v996 = vxor.u32 %v995, 2147483648
    %v997 = vmul.f32 %v996, 1.442695
    %v998 = vpow.pop %v997
    %v999 = vadd.f32 %v998, 1.0
    %v1000 = vrcp.pop %v999
    %v1001 = vmul.f32 %v999, %v1000
    %v1002 = vsub.f32 1.0, %v1001
    %v1003 = vmul.f32 %v1000, %v1002
    %v1004 = vadd.f32 %v1000, %v1003
    %vm1005 = vweird.f32 %v999
    %vm1006 = vweird.f32 %v1000
    %vm1007 = vmor %vm1005, %vm1006
    %v1008 = vsel %vm1007, %v1000, %v1004
    %v1009 = vand.u32 2147483647, %v999
    %vm1010 = vcmp.eq.f32.partialorder %v1009, 8.507059e+37
    %v1011 = vand.u32 %v999, 2147483648
    %v1012 = vor.u32 1.1754944e-38, %v1011
    %v1013 = vsel %vm1010, %v1012, %v1008
    %v1014 = vmul.f32 1.0, %v1013
    %v1015 = vtanh.pop %v995
    %v1017 = vrot.slane %v959, 6
    %v1019 = vmul.f32 %v1014, %v1017
    %1021 = vrot.lane.b32.xlu0 %v1015, 64
    %v1022 = vpop.permute.xlu0 %1021
    %v1024 = vmul.f32 %v1014, %v1022
    %1026 = vrot.lane.b32.xlu0 %v1024, 32
    %v1027 = vpop.permute.xlu0 %1026
    %v1029 = vadd.f32 %v1019, %v1027
    %v1030 = vtanh.pop %v1029
    %1032 = vrot.lane.b32.xlu0 %v1030, 64
    %v1033 = vpop.permute.xlu0 %1032
    %v1035 = vmul.f32 %v1014, %v1033
    %v1037 = vrot.slane %v1035, 4
    %1038 = vrot.lane.b32.xlu0 %v1037, 32
    %v1039 = vpop.permute.xlu0 %1038
    %v1040 = vsel %vm180, %v1039, 0
    %1042 = vmatpush.msra.mxu0 0.0
    %1043 = vmatpush.msra.mxu0 0.0
    %1044 = vmatpush.msra.mxu0 0.0
    %1045 = vmatpush.msra.mxu0 0.0
    %1046 = vmatpush.msra.mxu0 0.0
    %1047 = vmatpush.msra.mxu0 0.0
    %1048 = vmatpush.msra.mxu0 0.0
    %1049 = vmatpush.msra.mxu0 0.0
    %1050 = vmatpush.msra.mxu0 0.0
    %1051 = vmatpush.msra.mxu0 0.0
    %1052 = vmatpush.msra.mxu0 0.0
    %1053 = vmatpush.msra.mxu0 0.0
    %1054 = vmatpush.msra.mxu0 %v838
    %1055 = vmatpush.msra.mxu0 %v837
    %1056 = vmatpush.msra.mxu0 %v836
    %1057 = vmatpush.msra.mxu0 %v835
    %1058 = vmatmul.f32.gmra.mxu0 %v1040
    %v1059 = vpop.f32.mrf.mxu0
    %v1060 = vadd.f32 0.0, %v1059
    %1061 = vdwg.mxu0
    %v1063 = vrot.slane %v1060, 2
    %v1065 = vadd.f32 %v830, %v1063
    %v1066 = vxor.u32 %v1065, 2147483648
    %v1067 = vmul.f32 %v1066, 1.442695
    %v1068 = vpow.pop %v1067
    %v1069 = vadd.f32 %v1068, 1.0
    %v1070 = vrcp.pop %v1069
    %v1071 = vmul.f32 %v1069, %v1070
    %v1072 = vsub.f32 1.0, %v1071
    %v1073 = vmul.f32 %v1070, %v1072
    %v1074 = vadd.f32 %v1070, %v1073
    %vm1075 = vweird.f32 %v1069
    %vm1076 = vweird.f32 %v1070
    %vm1077 = vmor %vm1075, %vm1076
    %v1078 = vsel %vm1077, %v1070, %v1074
    %v1079 = vand.u32 2147483647, %v1069
    %vm1080 = vcmp.eq.f32.partialorder %v1079, 8.507059e+37
    %v1081 = vand.u32 %v1069, 2147483648
    %v1082 = vor.u32 1.1754944e-38, %v1081
    %v1083 = vsel %vm1080, %v1082, %v1078
    %v1084 = vmul.f32 1.0, %v1083
    %v1085 = vtanh.pop %v1065
    %v1087 = vrot.slane %v1029, 6
    %v1089 = vmul.f32 %v1084, %v1087
    %1091 = vrot.lane.b32.xlu0 %v1085, 64
    %v1092 = vpop.permute.xlu0 %1091
    %v1094 = vmul.f32 %v1084, %v1092
    %1096 = vrot.lane.b32.xlu0 %v1094, 32
    %v1097 = vpop.permute.xlu0 %1096
    %v1099 = vadd.f32 %v1089, %v1097
    %v1100 = vtanh.pop %v1099
    %1102 = vrot.lane.b32.xlu0 %v1100, 64
    %v1103 = vpop.permute.xlu0 %1102
    %v1105 = vmul.f32 %v1084, %v1103
    %v1107 = vrot.slane %v1105, 6
    %1108 = vrot.lane.b32.xlu0 %v1107, 32
    %v1109 = vpop.permute.xlu0 %1108
    %v1110 = vsel %vm180, %v1109, 0
    %1112 = vmatpush.msra.mxu0 0.0
    %1113 = vmatpush.msra.mxu0 0.0
    %1114 = vmatpush.msra.mxu0 0.0
    %1115 = vmatpush.msra.mxu0 0.0
    %1116 = vmatpush.msra.mxu0 0.0
    %1117 = vmatpush.msra.mxu0 0.0
    %1118 = vmatpush.msra.mxu0 0.0
    %1119 = vmatpush.msra.mxu0 0.0
    %1120 = vmatpush.msra.mxu0 0.0
    %1121 = vmatpush.msra.mxu0 0.0
    %1122 = vmatpush.msra.mxu0 0.0
    %1123 = vmatpush.msra.mxu0 0.0
    %1124 = vmatpush.msra.mxu0 %v838
    %1125 = vmatpush.msra.mxu0 %v837
    %1126 = vmatpush.msra.mxu0 %v836
    %1127 = vmatpush.msra.mxu0 %v835
    %1128 = vmatmul.f32.gmra.mxu0 %v1110
    %v1129 = vpop.f32.mrf.mxu0
    %v1130 = vadd.f32 0.0, %v1129
    %1131 = vdwg.mxu0
    %v1132 = vadd.f32 %v833, %v1130
    %v1133 = vxor.u32 %v1132, 2147483648
    %v1134 = vmul.f32 %v1133, 1.442695
    %v1135 = vpow.pop %v1134
    %v1136 = vadd.f32 %v1135, 1.0
    %v1137 = vrcp.pop %v1136
    %v1138 = vmul.f32 %v1136, %v1137
    %v1139 = vsub.f32 1.0, %v1138
    %v1140 = vmul.f32 %v1137, %v1139
    %v1141 = vadd.f32 %v1137, %v1140
    %vm1142 = vweird.f32 %v1136
    %vm1143 = vweird.f32 %v1137
    %vm1144 = vmor %vm1142, %vm1143
    %v1145 = vsel %vm1144, %v1137, %v1141
    %v1146 = vand.u32 2147483647, %v1136
    %vm1147 = vcmp.eq.f32.partialorder %v1146, 8.507059e+37
    %v1148 = vand.u32 %v1136, 2147483648
    %v1149 = vor.u32 1.1754944e-38, %v1148
    %v1150 = vsel %vm1147, %v1149, %v1145
    %v1151 = vmul.f32 1.0, %v1150
    %v1152 = vtanh.pop %v1132
    %v1154 = vrot.slane %v1099, 6
    %v1156 = vmul.f32 %v1151, %v1154
    %1158 = vrot.lane.b32.xlu0 %v1152, 64
    %v1159 = vpop.permute.xlu0 %1158
    %v1161 = vmul.f32 %v1151, %v1159
    %1163 = vrot.lane.b32.xlu0 %v1161, 32
    %v1164 = vpop.permute.xlu0 %1163
    %v1166 = vadd.f32 %v1156, %v1164
    %v1167 = vtanh.pop %v1166
    %1169 = vrot.lane.b32.xlu0 %v1167, 64
    %v1170 = vpop.permute.xlu0 %1169
    %v1172 = vmul.f32 %v1151, %v1170
    %1174 = vrot.lane.b32.xlu0 %v1172, 32
    %v1175 = vpop.permute.xlu0 %1174
    %v1176 = vsel %vm180, %v1175, 0
    %1178 = vmatpush.msra.mxu0 0.0
    %1179 = vmatpush.msra.mxu0 0.0
    %1180 = vmatpush.msra.mxu0 0.0
    %1181 = vmatpush.msra.mxu0 0.0
    %1182 = vmatpush.msra.mxu0 0.0
    %1183 = vmatpush.msra.mxu0 0.0
    %1184 = vmatpush.msra.mxu0 0.0
    %1185 = vmatpush.msra.mxu0 0.0
    %1186 = vmatpush.msra.mxu0 0.0
    %1187 = vmatpush.msra.mxu0 0.0
    %1188 = vmatpush.msra.mxu0 0.0
    %1189 = vmatpush.msra.mxu0 0.0
    %1190 = vmatpush.msra.mxu0 %v838
    %1191 = vmatpush.msra.mxu0 %v837
    %1192 = vmatpush.msra.mxu0 %v836
    %1193 = vmatpush.msra.mxu0 %v835
    %1194 = vmatmul.f32.gmra.mxu0 %v1176
    %v1195 = vpop.f32.mrf.mxu0
    %v1196 = vadd.f32 0.0, %v1195
    %1197 = vdwg.mxu0
    %v1199 = vrot.slane %v1196, 6
    %v1201 = vadd.f32 %v833, %v1199
    %v1202 = vxor.u32 %v1201, 2147483648
    %v1203 = vmul.f32 %v1202, 1.442695
    %v1204 = vpow.pop %v1203
    %v1205 = vadd.f32 %v1204, 1.0
    %v1206 = vrcp.pop %v1205
    %v1207 = vmul.f32 %v1205, %v1206
    %v1208 = vsub.f32 1.0, %v1207
    %v1209 = vmul.f32 %v1206, %v1208
    %v1210 = vadd.f32 %v1206, %v1209
    %vm1211 = vweird.f32 %v1205
    %vm1212 = vweird.f32 %v1206
    %vm1213 = vmor %vm1211, %vm1212
    %v1214 = vsel %vm1213, %v1206, %v1210
    %v1215 = vand.u32 2147483647, %v1205
    %vm1216 = vcmp.eq.f32.partialorder %v1215, 8.507059e+37
    %v1217 = vand.u32 %v1205, 2147483648
    %v1218 = vor.u32 1.1754944e-38, %v1217
    %v1219 = vsel %vm1216, %v1218, %v1214
    %v1220 = vmul.f32 1.0, %v1219
    %v1221 = vtanh.pop %v1201
    %v1223 = vrot.slane %v1166, 6
    %v1225 = vmul.f32 %v1220, %v1223
    %1227 = vrot.lane.b32.xlu0 %v1221, 64
    %v1228 = vpop.permute.xlu0 %1227
    %v1230 = vmul.f32 %v1220, %v1228
    %1232 = vrot.lane.b32.xlu0 %v1230, 32
    %v1233 = vpop.permute.xlu0 %1232
    %v1235 = vadd.f32 %v1225, %v1233
    %v1236 = vtanh.pop %v1235
    %1238 = vrot.lane.b32.xlu0 %v1236, 64
    %v1239 = vpop.permute.xlu0 %1238
    %v1241 = vmul.f32 %v1220, %v1239
    %v1243 = vrot.slane %v1241, 2
    %1244 = vrot.lane.b32.xlu0 %v1243, 32
    %v1245 = vpop.permute.xlu0 %1244
    %v1246 = vsel %vm180, %v1245, 0
    %1248 = vmatpush.msra.mxu0 0.0
    %1249 = vmatpush.msra.mxu0 0.0
    %1250 = vmatpush.msra.mxu0 0.0
    %1251 = vmatpush.msra.mxu0 0.0
    %1252 = vmatpush.msra.mxu0 0.0
    %1253 = vmatpush.msra.mxu0 0.0
    %1254 = vmatpush.msra.mxu0 0.0
    %1255 = vmatpush.msra.mxu0 0.0
    %1256 = vmatpush.msra.mxu0 0.0
    %1257 = vmatpush.msra.mxu0 0.0
    %1258 = vmatpush.msra.mxu0 0.0
    %1259 = vmatpush.msra.mxu0 0.0
    %1260 = vmatpush.msra.mxu0 %v838
    %1261 = vmatpush.msra.mxu0 %v837
    %1262 = vmatpush.msra.mxu0 %v836
    %1263 = vmatpush.msra.mxu0 %v835
    %1264 = vmatmul.f32.gmra.mxu0 %v1246
    %v1265 = vpop.f32.mrf.mxu0
    %v1266 = vadd.f32 0.0, %v1265
    %1267 = vdwg.mxu0
    %v1269 = vrot.slane %v1266, 4
    %v1271 = vadd.f32 %v833, %v1269
    %v1272 = vxor.u32 %v1271, 2147483648
    %v1273 = vmul.f32 %v1272, 1.442695
    %v1274 = vpow.pop %v1273
    %v1275 = vadd.f32 %v1274, 1.0
    %v1276 = vrcp.pop %v1275
    %v1277 = vmul.f32 %v1275, %v1276
    %v1278 = vsub.f32 1.0, %v1277
    %v1279 = vmul.f32 %v1276, %v1278
    %v1280 = vadd.f32 %v1276, %v1279
    %vm1281 = vweird.f32 %v1275
    %vm1282 = vweird.f32 %v1276
    %vm1283 = vmor %vm1281, %vm1282
    %v1284 = vsel %vm1283, %v1276, %v1280
    %v1285 = vand.u32 2147483647, %v1275
    %vm1286 = vcmp.eq.f32.partialorder %v1285, 8.507059e+37
    %v1287 = vand.u32 %v1275, 2147483648
    %v1288 = vor.u32 1.1754944e-38, %v1287
    %v1289 = vsel %vm1286, %v1288, %v1284
    %v1290 = vmul.f32 1.0, %v1289
    %v1291 = vtanh.pop %v1271
    %v1293 = vrot.slane %v1235, 6
    %v1295 = vmul.f32 %v1290, %v1293
    %1297 = vrot.lane.b32.xlu0 %v1291, 64
    %v1298 = vpop.permute.xlu0 %1297
    %v1300 = vmul.f32 %v1290, %v1298
    %1302 = vrot.lane.b32.xlu0 %v1300, 32
    %v1303 = vpop.permute.xlu0 %1302
    %v1305 = vadd.f32 %v1295, %v1303
    %v1306 = vtanh.pop %v1305
    %1308 = vrot.lane.b32.xlu0 %v1306, 64
    %v1309 = vpop.permute.xlu0 %1308
    %v1311 = vmul.f32 %v1290, %v1309
    %v1313 = vrot.slane %v1311, 4
    %1314 = vrot.lane.b32.xlu0 %v1313, 32
    %v1315 = vpop.permute.xlu0 %1314
    %v1316 = vsel %vm180, %v1315, 0
    %1318 = vmatpush.msra.mxu0 0.0
    %1319 = vmatpush.msra.mxu0 0.0
    %1320 = vmatpush.msra.mxu0 0.0
    %1321 = vmatpush.msra.mxu0 0.0
    %1322 = vmatpush.msra.mxu0 0.0
    %1323 = vmatpush.msra.mxu0 0.0
    %1324 = vmatpush.msra.mxu0 0.0
    %1325 = vmatpush.msra.mxu0 0.0
    %1326 = vmatpush.msra.mxu0 0.0
    %1327 = vmatpush.msra.mxu0 0.0
    %1328 = vmatpush.msra.mxu0 0.0
    %1329 = vmatpush.msra.mxu0 0.0
    %1330 = vmatpush.msra.mxu0 %v838
    %1331 = vmatpush.msra.mxu0 %v837
    %1332 = vmatpush.msra.mxu0 %v836
    %1333 = vmatpush.msra.mxu0 %v835
    %1334 = vmatmul.f32.gmra.mxu0 %v1316
    %v1335 = vpop.f32.mrf.mxu0
    %v1336 = vadd.f32 0.0, %v1335
    %1337 = vdwg.mxu0
    %v1339 = vrot.slane %v1336, 2
    %v1341 = vadd.f32 %v833, %v1339
    %v1342 = vxor.u32 %v1341, 2147483648
    %v1343 = vmul.f32 %v1342, 1.442695
    %v1344 = vpow.pop %v1343
    %v1345 = vadd.f32 %v1344, 1.0
    %v1346 = vrcp.pop %v1345
    %v1347 = vmul.f32 %v1345, %v1346
    %v1348 = vsub.f32 1.0, %v1347
    %v1349 = vmul.f32 %v1346, %v1348
    %v1350 = vadd.f32 %v1346, %v1349
    %vm1351 = vweird.f32 %v1345
    %vm1352 = vweird.f32 %v1346
    %vm1353 = vmor %vm1351, %vm1352
    %v1354 = vsel %vm1353, %v1346, %v1350
    %v1355 = vand.u32 2147483647, %v1345
    %vm1356 = vcmp.eq.f32.partialorder %v1355, 8.507059e+37
    %v1357 = vand.u32 %v1345, 2147483648
    %v1358 = vor.u32 1.1754944e-38, %v1357
    %v1359 = vsel %vm1356, %v1358, %v1354
    %v1360 = vmul.f32 1.0, %v1359
    %v1361 = vtanh.pop %v1341
    %v1363 = vrot.slane %v1305, 6
    %v1365 = vmul.f32 %v1360, %v1363
    %1367 = vrot.lane.b32.xlu0 %v1361, 64
    %v1368 = vpop.permute.xlu0 %1367
    %v1370 = vmul.f32 %v1360, %v1368
    %1372 = vrot.lane.b32.xlu0 %v1370, 32
    %v1373 = vpop.permute.xlu0 %1372
    %v1375 = vadd.f32 %v1365, %v1373
    %v1376 = vtanh.pop %v1375
    %1378 = vrot.lane.b32.xlu0 %v1376, 64
    %v1379 = vpop.permute.xlu0 %1378
    %v1381 = vmul.f32 %v1360, %v1379
    %v1382 = vld [vmem:[%s7] sm:$0x1]
    %v1384 = vperm.slane %v1382, 0
    %1385 = vrot.lane.b32.xlu0 %v1384, 96
    %v1386 = vpop.permute.xlu0 %1385
    %v1388 = vmul.f32 %v1381, %v1386
    %1390 = vrot.lane.b32.xlu0 %v1388, 32
    %v1391 = vpop.permute.xlu0 %1390
    %v1393 = vsel %vm471, %v1391, 0.0
    %1394 = vadd.xlane.f32.xlu0 %v1393
    %v1395 = vpop.xlane.xlu0 %1394
    %v1396 = vld [vmem:[#allocation3] sm:$0x1]
    %v1398 = vperm.slane %v1396, 0
    %v1400 = vadd.f32 %v1395, %v1398
    %v1401 = vmax.f32 %v1400, 0.0
    %vm1402 = vcmask 7174
    %1403 = vst.msk [vmem:[%s9 - $0x6] sm:$0xc0] %vm1402, %v1401
    // Predicated region
    $region58: #{tpu_custom_call.1} parent=1 // pred_check
      _
    $region59: #{tpu_custom_call.1} parent=1 // pred_check_branch
      %1405 = sbr.rel (0) target = $region61
    $region60: #{tpu_custom_call.1} parent=1 // pred_region
      _
    $region61: #{tpu_custom_call.1} parent=1 // pred_fallthru
      _
    // Predicated region
    $region62: #{tpu_custom_call.1} parent=1 // pred_check
      _
    $region63: #{tpu_custom_call.1} parent=1 // pred_check_branch
      %1407 = sbr.rel (0) target = $region65
    $region64: #{tpu_custom_call.1} parent=1 // pred_region
      _
    $region65: #{tpu_custom_call.1} parent=1 // pred_fallthru
      _
    %1408 = vsyncpa [#allocation5], 1
    %1409 = vsyncpa [#allocation7], 1
    %1410 = vsyncpa [#allocation10], 1

</llo_original>
